<compile_context>
chip_gen: v7x
topology: tpu7x:2x2x1
jax: 0.10.0
libtpu: 0.0.40
codegen_flags: <defaults>
</compile_context>

<pallas_src>
import jax
import jax.numpy as jnp
from jax import lax
from jax.experimental import pallas as pl
from jax.experimental.pallas import tpu as pltpu

# ----------------------------- hyper-parameters (small, deterministic) -----------------------------
VOCAB_SIZE = 32
EMBEDDING_SIZE = 32
LSTM_SIZE = 32
NUM_LAYERS = 2            # kernel below is specialized for exactly 2 stacked layers
IMAGE_FEAT_DIM = 64
COMMON_EMBEDDING_SIZE = 32
NOUTPUT = 16
BATCH = 4
SEQ_LEN = 8
B_BLOCK = 8               # per-grid-step batch tile (sublane-friendly); grid shards blocks


# ----------------------------- fused forward kernel -----------------------------
def vqa_fused_kernel(ints_ref,    # (T*BB + BB, 1) int32: [token ids (t-major) ; lengths]
                     image_ref,   # (BB, IMAGE_FEAT_DIM) f32
                     w128_ref,    # (418, 128) f32 packed: Wih0|Whh0p|Wih1p|Whh1p|b0|b1
                     w32_ref,     # (259, 32)  f32 packed: emb|Wq_p|Wi|Wo_p|bq|bi|bo_p
                     out_ref):    # (BB, NOUTPUT) f32
    BB, IMG = image_ref.shape
    T = (ints_ref.shape[0] - BB) // BB
    H = LSTM_SIZE
    G = 4 * H                     # 128: one full lane vector holds all four gates [i|f|g|o]
    E, V, C = EMBEDDING_SIZE, VOCAB_SIZE, COMMON_EMBEDDING_SIZE
    f32 = jnp.float32
    cdt = jnp.bfloat16            # MXU operand dtype on the recurrence critical path

    # ---------------- hoisted loads (once per grid step) ----------------
    ids = ints_ref[0:T * BB, :]                   # (T*BB, 1) int32, row = t*BB + b
    lengths = ints_ref[T * BB:T * BB + BB, :]     # (BB, 1) int32

    w_ih0 = w128_ref[0:E, :]                                  # (E, 4H), f32 (off critical path)
    w_hh0 = w128_ref[E:E + G, :].astype(cdt)                  # (4H, 4H), rows >= H are zero
    w_ih1 = w128_ref[E + G:E + 2 * G, :].astype(cdt)          # (4H, 4H), rows >= H are zero
    w_hh1 = w128_ref[E + 2 * G:E + 3 * G, :].astype(cdt)      # (4H, 4H), rows >= H are zero
    b0 = w128_ref[E + 3 * G:E + 3 * G + 1, :]                 # (1, 4H) -> folded into precompute
    b1 = jnp.broadcast_to(w128_ref[E + 3 * G + 1:E + 3 * G + 2, :], (BB, G))  # hoisted broadcast

    r = 0
    emb = w32_ref[r:r + V, :]; r += V                          # (V, E)
    wq = w32_ref[r:r + G, :]; r += G                           # (4H, C), rows >= H are zero
    wi = w32_ref[r:r + IMG, :]; r += IMG                       # (IMG, C)
    wo = w32_ref[r:r + C, :]; r += C                           # (C, C), cols >= NOUTPUT are zero
    bq = w32_ref[r:r + 1, :]                                   # (1, C)
    bi = w32_ref[r + 1:r + 2, :]                               # (1, C)
    bo = w32_ref[r + 2:r + 3, :]                               # (1, C), lanes >= NOUTPUT are zero

    # ------------- batched precompute, off the serial recurrence (items 1 & 2) -------------
    iota_v = lax.broadcasted_iota(jnp.int32, (T * BB, V), 1)
    onehot = (ids == iota_v).astype(f32)                                      # (T*BB, V)
    x_all = jnp.tanh(jnp.dot(onehot, emb, preferred_element_type=f32))        # (T*BB, E)
    xw0_all = jnp.dot(x_all, w_ih0, preferred_element_type=f32) + b0          # (T*BB, 4H)

    zeros = jnp.zeros((BB, G), f32)
    h0, c0, h1, c1, q_enc = zeros, zeros, zeros, zeros, zeros

    # LSTM cell on full-width (BB, 4H) gate vregs. i/f/g/o occupy lane groups [0:H|H:2H|2H:3H|3H:4H];
    # pltpu.roll aligns f/g/o onto the i lane group (XLU slot, no sub-vreg lane slices).
    # Lanes >= H of h/c hold bounded garbage that is killed by zero rows of the padded weights.
    def cell(gates, c_prev):
        sig = jax.nn.sigmoid(gates)          # full-width EUP: i, f, o
        tan = jnp.tanh(gates)                # full-width EUP: g
        c_new = pltpu.roll(sig, 3 * H, axis=1) * c_prev + sig * pltpu.roll(tan, 2 * H, axis=1)
        h_new = pltpu.roll(sig, H, axis=1) * jnp.tanh(c_new)
        return h_new, c_new

    # ------------- static fully-unrolled recurrence (T = 8) -------------
    for t in range(T):
        # layer 0: precomputed input-gate contribution + recurrent matmul only (item 2)
        gates0 = xw0_all[t * BB:(t + 1) * BB, :] + jnp.dot(
            h0.astype(cdt), w_hh0, preferred_element_type=f32)
        h0, c0 = cell(gates0, c0)

        # layer 1: two accumulated dots, no lane concatenation (item 3)
        gates1 = (jnp.dot(h0.astype(cdt), w_ih1, preferred_element_type=f32)
                  + jnp.dot(h1.astype(cdt), w_hh1, preferred_element_type=f32)
                  + b1)
        h1, c1 = cell(gates1, c1)

        # pack_padded_sequence equivalent: keep last-layer hidden at t = lengths-1
        q_enc = jnp.where(lengths == (t + 1), h1, q_enc)

    # ------------- multimodal fusion (dropout == identity in eval mode) -------------
    q_proj = jnp.tanh(jnp.dot(q_enc, wq, preferred_element_type=f32) + bq)               # (BB, C)
    i_proj = jnp.tanh(jnp.dot(image_ref[...], wi, preferred_element_type=f32) + bi)      # (BB, C)
    fused = q_proj * i_proj
    logits = jnp.dot(fused, wo, preferred_element_type=f32) + bo                         # (BB, C)
    out_ref[...] = logits[:, :NOUTPUT]


# ----------------------------- wrapper (grid over batch blocks) -----------------------------
def vqa_forward(params, question, lengths, image):
    B, T = question.shape
    BB = B_BLOCK
    n_blk = -(-B // BB)
    Bp = n_blk * BB
    pad_b = Bp - B

    q_p = jnp.pad(question.astype(jnp.int32), ((0, pad_b), (0, 0)))
    len_p = jnp.pad(lengths.astype(jnp.int32), ((0, pad_b),), constant_values=1)
    img_p = jnp.pad(image.astype(jnp.float32), ((0, pad_b), (0, 0)))

    # token ids t-major inside each batch block (row = t*BB + b) so the per-step slice of the
    # precomputed layer-0 activations is a contiguous, sublane-tile-aligned (BB, 4H) window.
    q_blk = q_p.reshape(n_blk, BB, T).transpose(0, 2, 1).reshape(n_blk, T * BB, 1)
    len_blk = len_p.reshape(n_blk, BB, 1)
    ints = jnp.concatenate([q_blk, len_blk], axis=1)            # (n_blk, T*BB + BB, 1) int32
    img_blk = img_p.reshape(n_blk, BB, IMAGE_FEAT_DIM)

    out = pl.pallas_call(
        vqa_fused_kernel,
        out_shape=jax.ShapeDtypeStruct((n_blk, BB, NOUTPUT), jnp.float32),
        grid=(n_blk,),
        in_specs=[
            pl.BlockSpec((None, T * BB + BB, 1), lambda i: (i, 0, 0)),
            pl.BlockSpec((None, BB, IMAGE_FEAT_DIM), lambda i: (i, 0, 0)),
            pl.BlockSpec(params["w128"].shape, lambda i: (0, 0)),   # weights: same block every step
            pl.BlockSpec(params["w32"].shape, lambda i: (0, 0)),
        ],
        out_specs=pl.BlockSpec((None, BB, NOUTPUT), lambda i: (i, 0, 0)),
        compiler_params=pltpu.CompilerParams(dimension_semantics=("parallel",)),
    )(ints, img_blk, params["w128"], params["w32"])

    return out.reshape(Bp, NOUTPUT)[:B]


# ----------------------------- parameters (deterministic, packed) -----------------------------
def init_params(key):
    assert NUM_LAYERS == 2, "fused kernel is specialized for 2 stacked LSTM layers"
    ks = jax.random.split(key, 16)
    s = 0.1
    H, E, V, C, G = LSTM_SIZE, EMBEDDING_SIZE, VOCAB_SIZE, COMMON_EMBEDDING_SIZE, 4 * LSTM_SIZE

    def rnd(k, shape):
        return s * jax.random.normal(k, shape, jnp.float32)

    emb = rnd(ks[0], (V, E))
    # merged (in, 4H) weights, gate column order [i | f | g | o]; biases are b_ih + b_hh folded
    w_ih0 = rnd(ks[1], (E, G)); w_hh0 = rnd(ks[2], (H, G)); b0 = rnd(ks[3], (1, G))
    w_ih1 = rnd(ks[4], (H, G)); w_hh1 = rnd(ks[5], (H, G)); b1 = rnd(ks[6], (1, G))
    wq = rnd(ks[7], (H, C)); bq = rnd(ks[8], (1, C))
    wi = rnd(ks[9], (IMAGE_FEAT_DIM, C)); bi = rnd(ks[10], (1, C))
    wo = rnd(ks[11], (C, NOUTPUT)); bo = rnd(ks[12], (1, NOUTPUT))

    def pad_rows(w, rows):   # zero-padded rows absorb the garbage lanes of full-width LSTM state
        return jnp.concatenate([w, jnp.zeros((rows - w.shape[0], w.shape[1]), w.dtype)], axis=0)

    w128 = jnp.concatenate(
        [w_ih0, pad_rows(w_hh0, G), pad_rows(w_ih1, G), pad_rows(w_hh1, G), b0, b1], axis=0)

    wo_p = jnp.concatenate([wo, jnp.zeros((C, C - NOUTPUT), jnp.float32)], axis=1)
    bo_p = jnp.concatenate([bo, jnp.zeros((1, C - NOUTPUT), jnp.float32)], axis=1)
    w32 = jnp.concatenate([emb, pad_rows(wq, G), wi, wo_p, bq, bi, bo_p], axis=0)

    return {"w128": w128, "w32": w32}


if __name__ == "__main__":
    key = jax.random.PRNGKey(0)
    k_param, k_q, k_img = jax.random.split(key, 3)

    params = init_params(k_param)
    question = jax.random.randint(k_q, (BATCH, SEQ_LEN), 0, VOCAB_SIZE, dtype=jnp.int32)
    lengths = jnp.array([SEQ_LEN, 5, 3, SEQ_LEN], dtype=jnp.int32)   # must be in [1, SEQ_LEN]
    image = jax.random.normal(k_img, (BATCH, IMAGE_FEAT_DIM), jnp.float32)

    fwd = jax.jit(vqa_forward)
    out = jax.block_until_ready(fwd(params, question, lengths, image))
    assert out.shape == (BATCH, NOUTPUT) and out.dtype == jnp.float32
    print("KERNEL_OK")
</pallas_src>

<mosaic_0001>
module attributes {stable_mosaic.version = 11 : i64} {
  func.func @vqa_fused_kernel(%arg0: i32, %arg1: memref<1x72x1xi32, #tpu.memory_space<vmem>>, %arg2: memref<1x8x64xf32, #tpu.memory_space<vmem>>, %arg3: memref<418x128xf32, #tpu.memory_space<vmem>>, %arg4: memref<259x32xf32, #tpu.memory_space<vmem>>, %arg5: memref<1x8x16xf32, #tpu.memory_space<vmem>>) attributes {dimension_semantics = [#tpu.dimension_semantics<parallel>], iteration_bounds = array<i64: 1>, scalar_prefetch = 0 : i64, scratch_operands = 0 : i64, tpu.core_type = #tpu.core_type<tc>, window_params = [{transform_indices = @transform_0, window_bounds = array<i64: 1, 72, 1>}, {transform_indices = @transform_1, window_bounds = array<i64: 1, 8, 64>}, {pipeline_mode = #tpu.pipeline_mode<synchronous>, transform_indices = @transform_2, window_bounds = array<i64: 418, 128>}, {pipeline_mode = #tpu.pipeline_mode<synchronous>, transform_indices = @transform_3, window_bounds = array<i64: 259, 32>}, {transform_indices = @transform_4, window_bounds = array<i64: 1, 8, 16>}]} {
    %c0 = arith.constant 0 : index
    %c0_0 = arith.constant 0 : index
    %c0_1 = arith.constant 0 : index
    %0 = vector.load %arg1[%c0, %c0_0, %c0_1] : memref<1x72x1xi32, #tpu.memory_space<vmem>>, vector<1x64x1xi32>
    %1 = vector.shape_cast %0 : vector<1x64x1xi32> to vector<64x1xi32>
    %c0_2 = arith.constant 0 : index
    %c64 = arith.constant 64 : index
    %c0_3 = arith.constant 0 : index
    %2 = vector.load %arg1[%c0_2, %c64, %c0_3] : memref<1x72x1xi32, #tpu.memory_space<vmem>>, vector<1x8x1xi32>
    %3 = vector.shape_cast %2 : vector<1x8x1xi32> to vector<8x1xi32>
    %c0_4 = arith.constant 0 : index
    %c0_5 = arith.constant 0 : index
    %4 = vector.load %arg3[%c0_4, %c0_5] : memref<418x128xf32, #tpu.memory_space<vmem>>, vector<32x128xf32>
    %c32 = arith.constant 32 : index
    %c0_6 = arith.constant 0 : index
    %5 = vector.load %arg3[%c32, %c0_6] : memref<418x128xf32, #tpu.memory_space<vmem>>, vector<128x128xf32>
    %6 = arith.truncf %5 : vector<128x128xf32> to vector<128x128xbf16>
    %c160 = arith.constant 160 : index
    %c0_7 = arith.constant 0 : index
    %7 = vector.load %arg3[%c160, %c0_7] : memref<418x128xf32, #tpu.memory_space<vmem>>, vector<128x128xf32>
    %8 = arith.truncf %7 : vector<128x128xf32> to vector<128x128xbf16>
    %c288 = arith.constant 288 : index
    %c0_8 = arith.constant 0 : index
    %9 = vector.load %arg3[%c288, %c0_8] : memref<418x128xf32, #tpu.memory_space<vmem>>, vector<128x128xf32>
    %10 = arith.truncf %9 : vector<128x128xf32> to vector<128x128xbf16>
    %c416 = arith.constant 416 : index
    %c0_9 = arith.constant 0 : index
    %11 = vector.load %arg3[%c416, %c0_9] : memref<418x128xf32, #tpu.memory_space<vmem>>, vector<1x128xf32>
    %c417 = arith.constant 417 : index
    %c0_10 = arith.constant 0 : index
    %12 = vector.load %arg3[%c417, %c0_10] : memref<418x128xf32, #tpu.memory_space<vmem>>, vector<1x128xf32>
    %13 = vector.shape_cast %12 : vector<1x128xf32> to vector<1x128xf32>
    %14 = vector.broadcast %13 : vector<1x128xf32> to vector<8x128xf32>
    %c0_11 = arith.constant 0 : index
    %c0_12 = arith.constant 0 : index
    %15 = vector.load %arg4[%c0_11, %c0_12] : memref<259x32xf32, #tpu.memory_space<vmem>>, vector<32x32xf32>
    %c32_13 = arith.constant 32 : index
    %c0_14 = arith.constant 0 : index
    %16 = vector.load %arg4[%c32_13, %c0_14] : memref<259x32xf32, #tpu.memory_space<vmem>>, vector<128x32xf32>
    %c160_15 = arith.constant 160 : index
    %c0_16 = arith.constant 0 : index
    %17 = vector.load %arg4[%c160_15, %c0_16] : memref<259x32xf32, #tpu.memory_space<vmem>>, vector<64x32xf32>
    %c224 = arith.constant 224 : index
    %c0_17 = arith.constant 0 : index
    %18 = vector.load %arg4[%c224, %c0_17] : memref<259x32xf32, #tpu.memory_space<vmem>>, vector<32x32xf32>
    %c256 = arith.constant 256 : index
    %c0_18 = arith.constant 0 : index
    %19 = vector.load %arg4[%c256, %c0_18] : memref<259x32xf32, #tpu.memory_space<vmem>>, vector<1x32xf32>
    %c257 = arith.constant 257 : index
    %c0_19 = arith.constant 0 : index
    %20 = vector.load %arg4[%c257, %c0_19] : memref<259x32xf32, #tpu.memory_space<vmem>>, vector<1x32xf32>
    %c258 = arith.constant 258 : index
    %c0_20 = arith.constant 0 : index
    %21 = vector.load %arg4[%c258, %c0_20] : memref<259x32xf32, #tpu.memory_space<vmem>>, vector<1x32xf32>
    %22 = tpu.iota {dimensions = array<i32: 1>} : vector<64x32xi32>
    %23 = vector.broadcast %1 : vector<64x1xi32> to vector<64x32xi32>
    %24 = arith.cmpi eq, %23, %22 : vector<64x32xi32>
    %25 = arith.extui %24 : vector<64x32xi1> to vector<64x32xi32>
    %26 = arith.sitofp %25 : vector<64x32xi32> to vector<64x32xf32>
    %cst = arith.constant dense<0.000000e+00> : vector<64x32xf32>
    %27 = tpu.matmul %26, %15, %cst {dimension_numbers = #tpu.dot_dimension_numbers<[1], [0], [0], [1], [0, 0, 1, 1], [], []>} : vector<64x32xf32>, vector<32x32xf32>, vector<64x32xf32> -> vector<64x32xf32>
    %28 = math.tanh %27 : vector<64x32xf32>
    %cst_21 = arith.constant dense<0.000000e+00> : vector<64x128xf32>
    %29 = tpu.matmul %28, %4, %cst_21 {dimension_numbers = #tpu.dot_dimension_numbers<[1], [0], [0], [1], [0, 0, 1, 1], [], []>} : vector<64x32xf32>, vector<32x128xf32>, vector<64x128xf32> -> vector<64x128xf32>
    %30 = vector.broadcast %11 : vector<1x128xf32> to vector<64x128xf32>
    %31 = arith.addf %29, %30 : vector<64x128xf32>
    %cst_22 = arith.constant 0.000000e+00 : f32
    %32 = vector.broadcast %cst_22 : f32 to vector<8x128xf32>
    %33 = vector.extract_strided_slice %31 {offsets = [0, 0], sizes = [8, 128], strides = [1, 1]} : vector<64x128xf32> to vector<8x128xf32>
    %34 = arith.truncf %32 : vector<8x128xf32> to vector<8x128xbf16>
    %cst_23 = arith.constant dense<0.000000e+00> : vector<8x128xf32>
    %35 = tpu.matmul %34, %6, %cst_23 {dimension_numbers = #tpu.dot_dimension_numbers<[1], [0], [0], [1], [0, 0, 1, 1], [], []>} : vector<8x128xbf16>, vector<128x128xbf16>, vector<8x128xf32> -> vector<8x128xf32>
    %36 = arith.addf %33, %35 : vector<8x128xf32>
    %37 = arith.negf %36 : vector<8x128xf32>
    %38 = math.exp %37 : vector<8x128xf32>
    %cst_24 = arith.constant 1.000000e+00 : f32
    %39 = vector.broadcast %cst_24 : f32 to vector<8x128xf32>
    %40 = arith.addf %39, %38 : vector<8x128xf32>
    %41 = arith.divf %39, %40 : vector<8x128xf32>
    %42 = math.tanh %36 : vector<8x128xf32>
    %c96_i32 = arith.constant 96 : i32
    %43 = tpu.dynamic_rotate %41 by %c96_i32 dim 1 : vector<8x128xf32>, i32 -> vector<8x128xf32>
    %44 = arith.mulf %43, %32 : vector<8x128xf32>
    %c64_i32 = arith.constant 64 : i32
    %45 = tpu.dynamic_rotate %42 by %c64_i32 dim 1 : vector<8x128xf32>, i32 -> vector<8x128xf32>
    %46 = arith.mulf %41, %45 : vector<8x128xf32>
    %47 = arith.addf %44, %46 : vector<8x128xf32>
    %c32_i32 = arith.constant 32 : i32
    %48 = tpu.dynamic_rotate %41 by %c32_i32 dim 1 : vector<8x128xf32>, i32 -> vector<8x128xf32>
    %49 = math.tanh %47 : vector<8x128xf32>
    %50 = arith.mulf %48, %49 : vector<8x128xf32>
    %51 = arith.truncf %50 : vector<8x128xf32> to vector<8x128xbf16>
    %cst_25 = arith.constant dense<0.000000e+00> : vector<8x128xf32>
    %52 = tpu.matmul %51, %8, %cst_25 {dimension_numbers = #tpu.dot_dimension_numbers<[1], [0], [0], [1], [0, 0, 1, 1], [], []>} : vector<8x128xbf16>, vector<128x128xbf16>, vector<8x128xf32> -> vector<8x128xf32>
    %53 = arith.truncf %32 : vector<8x128xf32> to vector<8x128xbf16>
    %cst_26 = arith.constant dense<0.000000e+00> : vector<8x128xf32>
    %54 = tpu.matmul %53, %10, %cst_26 {dimension_numbers = #tpu.dot_dimension_numbers<[1], [0], [0], [1], [0, 0, 1, 1], [], []>} : vector<8x128xbf16>, vector<128x128xbf16>, vector<8x128xf32> -> vector<8x128xf32>
    %55 = arith.addf %52, %54 : vector<8x128xf32>
    %56 = arith.addf %55, %14 : vector<8x128xf32>
    %57 = arith.negf %56 : vector<8x128xf32>
    %58 = math.exp %57 : vector<8x128xf32>
    %cst_27 = arith.constant 1.000000e+00 : f32
    %59 = vector.broadcast %cst_27 : f32 to vector<8x128xf32>
    %60 = arith.addf %59, %58 : vector<8x128xf32>
    %61 = arith.divf %59, %60 : vector<8x128xf32>
    %62 = math.tanh %56 : vector<8x128xf32>
    %c96_i32_28 = arith.constant 96 : i32
    %63 = tpu.dynamic_rotate %61 by %c96_i32_28 dim 1 : vector<8x128xf32>, i32 -> vector<8x128xf32>
    %64 = arith.mulf %63, %32 : vector<8x128xf32>
    %c64_i32_29 = arith.constant 64 : i32
    %65 = tpu.dynamic_rotate %62 by %c64_i32_29 dim 1 : vector<8x128xf32>, i32 -> vector<8x128xf32>
    %66 = arith.mulf %61, %65 : vector<8x128xf32>
    %67 = arith.addf %64, %66 : vector<8x128xf32>
    %c32_i32_30 = arith.constant 32 : i32
    %68 = tpu.dynamic_rotate %61 by %c32_i32_30 dim 1 : vector<8x128xf32>, i32 -> vector<8x128xf32>
    %69 = math.tanh %67 : vector<8x128xf32>
    %70 = arith.mulf %68, %69 : vector<8x128xf32>
    %c1_i32 = arith.constant 1 : i32
    %71 = vector.broadcast %c1_i32 : i32 to vector<8x1xi32>
    %72 = arith.cmpi eq, %3, %71 : vector<8x1xi32>
    %73 = vector.shape_cast %72 : vector<8x1xi1> to vector<8x1xi1>
    %74 = vector.broadcast %73 : vector<8x1xi1> to vector<8x128xi1>
    %75 = arith.select %74, %70, %32 : vector<8x128xi1>, vector<8x128xf32>
    %76 = vector.extract_strided_slice %31 {offsets = [8, 0], sizes = [8, 128], strides = [1, 1]} : vector<64x128xf32> to vector<8x128xf32>
    %77 = arith.truncf %50 : vector<8x128xf32> to vector<8x128xbf16>
    %cst_31 = arith.constant dense<0.000000e+00> : vector<8x128xf32>
    %78 = tpu.matmul %77, %6, %cst_31 {dimension_numbers = #tpu.dot_dimension_numbers<[1], [0], [0], [1], [0, 0, 1, 1], [], []>} : vector<8x128xbf16>, vector<128x128xbf16>, vector<8x128xf32> -> vector<8x128xf32>
    %79 = arith.addf %76, %78 : vector<8x128xf32>
    %80 = arith.negf %79 : vector<8x128xf32>
    %81 = math.exp %80 : vector<8x128xf32>
    %cst_32 = arith.constant 1.000000e+00 : f32
    %82 = vector.broadcast %cst_32 : f32 to vector<8x128xf32>
    %83 = arith.addf %82, %81 : vector<8x128xf32>
    %84 = arith.divf %82, %83 : vector<8x128xf32>
    %85 = math.tanh %79 : vector<8x128xf32>
    %c96_i32_33 = arith.constant 96 : i32
    %86 = tpu.dynamic_rotate %84 by %c96_i32_33 dim 1 : vector<8x128xf32>, i32 -> vector<8x128xf32>
    %87 = arith.mulf %86, %47 : vector<8x128xf32>
    %c64_i32_34 = arith.constant 64 : i32
    %88 = tpu.dynamic_rotate %85 by %c64_i32_34 dim 1 : vector<8x128xf32>, i32 -> vector<8x128xf32>
    %89 = arith.mulf %84, %88 : vector<8x128xf32>
    %90 = arith.addf %87, %89 : vector<8x128xf32>
    %c32_i32_35 = arith.constant 32 : i32
    %91 = tpu.dynamic_rotate %84 by %c32_i32_35 dim 1 : vector<8x128xf32>, i32 -> vector<8x128xf32>
    %92 = math.tanh %90 : vector<8x128xf32>
    %93 = arith.mulf %91, %92 : vector<8x128xf32>
    %94 = arith.truncf %93 : vector<8x128xf32> to vector<8x128xbf16>
    %cst_36 = arith.constant dense<0.000000e+00> : vector<8x128xf32>
    %95 = tpu.matmul %94, %8, %cst_36 {dimension_numbers = #tpu.dot_dimension_numbers<[1], [0], [0], [1], [0, 0, 1, 1], [], []>} : vector<8x128xbf16>, vector<128x128xbf16>, vector<8x128xf32> -> vector<8x128xf32>
    %96 = arith.truncf %70 : vector<8x128xf32> to vector<8x128xbf16>
    %cst_37 = arith.constant dense<0.000000e+00> : vector<8x128xf32>
    %97 = tpu.matmul %96, %10, %cst_37 {dimension_numbers = #tpu.dot_dimension_numbers<[1], [0], [0], [1], [0, 0, 1, 1], [], []>} : vector<8x128xbf16>, vector<128x128xbf16>, vector<8x128xf32> -> vector<8x128xf32>
    %98 = arith.addf %95, %97 : vector<8x128xf32>
    %99 = arith.addf %98, %14 : vector<8x128xf32>
    %100 = arith.negf %99 : vector<8x128xf32>
    %101 = math.exp %100 : vector<8x128xf32>
    %cst_38 = arith.constant 1.000000e+00 : f32
    %102 = vector.broadcast %cst_38 : f32 to vector<8x128xf32>
    %103 = arith.addf %102, %101 : vector<8x128xf32>
    %104 = arith.divf %102, %103 : vector<8x128xf32>
    %105 = math.tanh %99 : vector<8x128xf32>
    %c96_i32_39 = arith.constant 96 : i32
    %106 = tpu.dynamic_rotate %104 by %c96_i32_39 dim 1 : vector<8x128xf32>, i32 -> vector<8x128xf32>
    %107 = arith.mulf %106, %67 : vector<8x128xf32>
    %c64_i32_40 = arith.constant 64 : i32
    %108 = tpu.dynamic_rotate %105 by %c64_i32_40 dim 1 : vector<8x128xf32>, i32 -> vector<8x128xf32>
    %109 = arith.mulf %104, %108 : vector<8x128xf32>
    %110 = arith.addf %107, %109 : vector<8x128xf32>
    %c32_i32_41 = arith.constant 32 : i32
    %111 = tpu.dynamic_rotate %104 by %c32_i32_41 dim 1 : vector<8x128xf32>, i32 -> vector<8x128xf32>
    %112 = math.tanh %110 : vector<8x128xf32>
    %113 = arith.mulf %111, %112 : vector<8x128xf32>
    %c2_i32 = arith.constant 2 : i32
    %114 = vector.broadcast %c2_i32 : i32 to vector<8x1xi32>
    %115 = arith.cmpi eq, %3, %114 : vector<8x1xi32>
    %116 = vector.shape_cast %115 : vector<8x1xi1> to vector<8x1xi1>
    %117 = vector.broadcast %116 : vector<8x1xi1> to vector<8x128xi1>
    %118 = arith.select %117, %113, %75 : vector<8x128xi1>, vector<8x128xf32>
    %119 = vector.extract_strided_slice %31 {offsets = [16, 0], sizes = [8, 128], strides = [1, 1]} : vector<64x128xf32> to vector<8x128xf32>
    %120 = arith.truncf %93 : vector<8x128xf32> to vector<8x128xbf16>
    %cst_42 = arith.constant dense<0.000000e+00> : vector<8x128xf32>
    %121 = tpu.matmul %120, %6, %cst_42 {dimension_numbers = #tpu.dot_dimension_numbers<[1], [0], [0], [1], [0, 0, 1, 1], [], []>} : vector<8x128xbf16>, vector<128x128xbf16>, vector<8x128xf32> -> vector<8x128xf32>
    %122 = arith.addf %119, %121 : vector<8x128xf32>
    %123 = arith.negf %122 : vector<8x128xf32>
    %124 = math.exp %123 : vector<8x128xf32>
    %cst_43 = arith.constant 1.000000e+00 : f32
    %125 = vector.broadcast %cst_43 : f32 to vector<8x128xf32>
    %126 = arith.addf %125, %124 : vector<8x128xf32>
    %127 = arith.divf %125, %126 : vector<8x128xf32>
    %128 = math.tanh %122 : vector<8x128xf32>
    %c96_i32_44 = arith.constant 96 : i32
    %129 = tpu.dynamic_rotate %127 by %c96_i32_44 dim 1 : vector<8x128xf32>, i32 -> vector<8x128xf32>
    %130 = arith.mulf %129, %90 : vector<8x128xf32>
    %c64_i32_45 = arith.constant 64 : i32
    %131 = tpu.dynamic_rotate %128 by %c64_i32_45 dim 1 : vector<8x128xf32>, i32 -> vector<8x128xf32>
    %132 = arith.mulf %127, %131 : vector<8x128xf32>
    %133 = arith.addf %130, %132 : vector<8x128xf32>
    %c32_i32_46 = arith.constant 32 : i32
    %134 = tpu.dynamic_rotate %127 by %c32_i32_46 dim 1 : vector<8x128xf32>, i32 -> vector<8x128xf32>
    %135 = math.tanh %133 : vector<8x128xf32>
    %136 = arith.mulf %134, %135 : vector<8x128xf32>
    %137 = arith.truncf %136 : vector<8x128xf32> to vector<8x128xbf16>
    %cst_47 = arith.constant dense<0.000000e+00> : vector<8x128xf32>
    %138 = tpu.matmul %137, %8, %cst_47 {dimension_numbers = #tpu.dot_dimension_numbers<[1], [0], [0], [1], [0, 0, 1, 1], [], []>} : vector<8x128xbf16>, vector<128x128xbf16>, vector<8x128xf32> -> vector<8x128xf32>
    %139 = arith.truncf %113 : vector<8x128xf32> to vector<8x128xbf16>
    %cst_48 = arith.constant dense<0.000000e+00> : vector<8x128xf32>
    %140 = tpu.matmul %139, %10, %cst_48 {dimension_numbers = #tpu.dot_dimension_numbers<[1], [0], [0], [1], [0, 0, 1, 1], [], []>} : vector<8x128xbf16>, vector<128x128xbf16>, vector<8x128xf32> -> vector<8x128xf32>
    %141 = arith.addf %138, %140 : vector<8x128xf32>
    %142 = arith.addf %141, %14 : vector<8x128xf32>
    %143 = arith.negf %142 : vector<8x128xf32>
    %144 = math.exp %143 : vector<8x128xf32>
    %cst_49 = arith.constant 1.000000e+00 : f32
    %145 = vector.broadcast %cst_49 : f32 to vector<8x128xf32>
    %146 = arith.addf %145, %144 : vector<8x128xf32>
    %147 = arith.divf %145, %146 : vector<8x128xf32>
    %148 = math.tanh %142 : vector<8x128xf32>
    %c96_i32_50 = arith.constant 96 : i32
    %149 = tpu.dynamic_rotate %147 by %c96_i32_50 dim 1 : vector<8x128xf32>, i32 -> vector<8x128xf32>
    %150 = arith.mulf %149, %110 : vector<8x128xf32>
    %c64_i32_51 = arith.constant 64 : i32
    %151 = tpu.dynamic_rotate %148 by %c64_i32_51 dim 1 : vector<8x128xf32>, i32 -> vector<8x128xf32>
    %152 = arith.mulf %147, %151 : vector<8x128xf32>
    %153 = arith.addf %150, %152 : vector<8x128xf32>
    %c32_i32_52 = arith.constant 32 : i32
    %154 = tpu.dynamic_rotate %147 by %c32_i32_52 dim 1 : vector<8x128xf32>, i32 -> vector<8x128xf32>
    %155 = math.tanh %153 : vector<8x128xf32>
    %156 = arith.mulf %154, %155 : vector<8x128xf32>
    %c3_i32 = arith.constant 3 : i32
    %157 = vector.broadcast %c3_i32 : i32 to vector<8x1xi32>
    %158 = arith.cmpi eq, %3, %157 : vector<8x1xi32>
    %159 = vector.shape_cast %158 : vector<8x1xi1> to vector<8x1xi1>
    %160 = vector.broadcast %159 : vector<8x1xi1> to vector<8x128xi1>
    %161 = arith.select %160, %156, %118 : vector<8x128xi1>, vector<8x128xf32>
    %162 = vector.extract_strided_slice %31 {offsets = [24, 0], sizes = [8, 128], strides = [1, 1]} : vector<64x128xf32> to vector<8x128xf32>
    %163 = arith.truncf %136 : vector<8x128xf32> to vector<8x128xbf16>
    %cst_53 = arith.constant dense<0.000000e+00> : vector<8x128xf32>
    %164 = tpu.matmul %163, %6, %cst_53 {dimension_numbers = #tpu.dot_dimension_numbers<[1], [0], [0], [1], [0, 0, 1, 1], [], []>} : vector<8x128xbf16>, vector<128x128xbf16>, vector<8x128xf32> -> vector<8x128xf32>
    %165 = arith.addf %162, %164 : vector<8x128xf32>
    %166 = arith.negf %165 : vector<8x128xf32>
    %167 = math.exp %166 : vector<8x128xf32>
    %cst_54 = arith.constant 1.000000e+00 : f32
    %168 = vector.broadcast %cst_54 : f32 to vector<8x128xf32>
    %169 = arith.addf %168, %167 : vector<8x128xf32>
    %170 = arith.divf %168, %169 : vector<8x128xf32>
    %171 = math.tanh %165 : vector<8x128xf32>
    %c96_i32_55 = arith.constant 96 : i32
    %172 = tpu.dynamic_rotate %170 by %c96_i32_55 dim 1 : vector<8x128xf32>, i32 -> vector<8x128xf32>
    %173 = arith.mulf %172, %133 : vector<8x128xf32>
    %c64_i32_56 = arith.constant 64 : i32
    %174 = tpu.dynamic_rotate %171 by %c64_i32_56 dim 1 : vector<8x128xf32>, i32 -> vector<8x128xf32>
    %175 = arith.mulf %170, %174 : vector<8x128xf32>
    %176 = arith.addf %173, %175 : vector<8x128xf32>
    %c32_i32_57 = arith.constant 32 : i32
    %177 = tpu.dynamic_rotate %170 by %c32_i32_57 dim 1 : vector<8x128xf32>, i32 -> vector<8x128xf32>
    %178 = math.tanh %176 : vector<8x128xf32>
    %179 = arith.mulf %177, %178 : vector<8x128xf32>
    %180 = arith.truncf %179 : vector<8x128xf32> to vector<8x128xbf16>
    %cst_58 = arith.constant dense<0.000000e+00> : vector<8x128xf32>
    %181 = tpu.matmul %180, %8, %cst_58 {dimension_numbers = #tpu.dot_dimension_numbers<[1], [0], [0], [1], [0, 0, 1, 1], [], []>} : vector<8x128xbf16>, vector<128x128xbf16>, vector<8x128xf32> -> vector<8x128xf32>
    %182 = arith.truncf %156 : vector<8x128xf32> to vector<8x128xbf16>
    %cst_59 = arith.constant dense<0.000000e+00> : vector<8x128xf32>
    %183 = tpu.matmul %182, %10, %cst_59 {dimension_numbers = #tpu.dot_dimension_numbers<[1], [0], [0], [1], [0, 0, 1, 1], [], []>} : vector<8x128xbf16>, vector<128x128xbf16>, vector<8x128xf32> -> vector<8x128xf32>
    %184 = arith.addf %181, %183 : vector<8x128xf32>
    %185 = arith.addf %184, %14 : vector<8x128xf32>
    %186 = arith.negf %185 : vector<8x128xf32>
    %187 = math.exp %186 : vector<8x128xf32>
    %cst_60 = arith.constant 1.000000e+00 : f32
    %188 = vector.broadcast %cst_60 : f32 to vector<8x128xf32>
    %189 = arith.addf %188, %187 : vector<8x128xf32>
    %190 = arith.divf %188, %189 : vector<8x128xf32>
    %191 = math.tanh %185 : vector<8x128xf32>
    %c96_i32_61 = arith.constant 96 : i32
    %192 = tpu.dynamic_rotate %190 by %c96_i32_61 dim 1 : vector<8x128xf32>, i32 -> vector<8x128xf32>
    %193 = arith.mulf %192, %153 : vector<8x128xf32>
    %c64_i32_62 = arith.constant 64 : i32
    %194 = tpu.dynamic_rotate %191 by %c64_i32_62 dim 1 : vector<8x128xf32>, i32 -> vector<8x128xf32>
    %195 = arith.mulf %190, %194 : vector<8x128xf32>
    %196 = arith.addf %193, %195 : vector<8x128xf32>
    %c32_i32_63 = arith.constant 32 : i32
    %197 = tpu.dynamic_rotate %190 by %c32_i32_63 dim 1 : vector<8x128xf32>, i32 -> vector<8x128xf32>
    %198 = math.tanh %196 : vector<8x128xf32>
    %199 = arith.mulf %197, %198 : vector<8x128xf32>
    %c4_i32 = arith.constant 4 : i32
    %200 = vector.broadcast %c4_i32 : i32 to vector<8x1xi32>
    %201 = arith.cmpi eq, %3, %200 : vector<8x1xi32>
    %202 = vector.shape_cast %201 : vector<8x1xi1> to vector<8x1xi1>
    %203 = vector.broadcast %202 : vector<8x1xi1> to vector<8x128xi1>
    %204 = arith.select %203, %199, %161 : vector<8x128xi1>, vector<8x128xf32>
    %205 = vector.extract_strided_slice %31 {offsets = [32, 0], sizes = [8, 128], strides = [1, 1]} : vector<64x128xf32> to vector<8x128xf32>
    %206 = arith.truncf %179 : vector<8x128xf32> to vector<8x128xbf16>
    %cst_64 = arith.constant dense<0.000000e+00> : vector<8x128xf32>
    %207 = tpu.matmul %206, %6, %cst_64 {dimension_numbers = #tpu.dot_dimension_numbers<[1], [0], [0], [1], [0, 0, 1, 1], [], []>} : vector<8x128xbf16>, vector<128x128xbf16>, vector<8x128xf32> -> vector<8x128xf32>
    %208 = arith.addf %205, %207 : vector<8x128xf32>
    %209 = arith.negf %208 : vector<8x128xf32>
    %210 = math.exp %209 : vector<8x128xf32>
    %cst_65 = arith.constant 1.000000e+00 : f32
    %211 = vector.broadcast %cst_65 : f32 to vector<8x128xf32>
    %212 = arith.addf %211, %210 : vector<8x128xf32>
    %213 = arith.divf %211, %212 : vector<8x128xf32>
    %214 = math.tanh %208 : vector<8x128xf32>
    %c96_i32_66 = arith.constant 96 : i32
    %215 = tpu.dynamic_rotate %213 by %c96_i32_66 dim 1 : vector<8x128xf32>, i32 -> vector<8x128xf32>
    %216 = arith.mulf %215, %176 : vector<8x128xf32>
    %c64_i32_67 = arith.constant 64 : i32
    %217 = tpu.dynamic_rotate %214 by %c64_i32_67 dim 1 : vector<8x128xf32>, i32 -> vector<8x128xf32>
    %218 = arith.mulf %213, %217 : vector<8x128xf32>
    %219 = arith.addf %216, %218 : vector<8x128xf32>
    %c32_i32_68 = arith.constant 32 : i32
    %220 = tpu.dynamic_rotate %213 by %c32_i32_68 dim 1 : vector<8x128xf32>, i32 -> vector<8x128xf32>
    %221 = math.tanh %219 : vector<8x128xf32>
    %222 = arith.mulf %220, %221 : vector<8x128xf32>
    %223 = arith.truncf %222 : vector<8x128xf32> to vector<8x128xbf16>
    %cst_69 = arith.constant dense<0.000000e+00> : vector<8x128xf32>
    %224 = tpu.matmul %223, %8, %cst_69 {dimension_numbers = #tpu.dot_dimension_numbers<[1], [0], [0], [1], [0, 0, 1, 1], [], []>} : vector<8x128xbf16>, vector<128x128xbf16>, vector<8x128xf32> -> vector<8x128xf32>
    %225 = arith.truncf %199 : vector<8x128xf32> to vector<8x128xbf16>
    %cst_70 = arith.constant dense<0.000000e+00> : vector<8x128xf32>
    %226 = tpu.matmul %225, %10, %cst_70 {dimension_numbers = #tpu.dot_dimension_numbers<[1], [0], [0], [1], [0, 0, 1, 1], [], []>} : vector<8x128xbf16>, vector<128x128xbf16>, vector<8x128xf32> -> vector<8x128xf32>
    %227 = arith.addf %224, %226 : vector<8x128xf32>
    %228 = arith.addf %227, %14 : vector<8x128xf32>
    %229 = arith.negf %228 : vector<8x128xf32>
    %230 = math.exp %229 : vector<8x128xf32>
    %cst_71 = arith.constant 1.000000e+00 : f32
    %231 = vector.broadcast %cst_71 : f32 to vector<8x128xf32>
    %232 = arith.addf %231, %230 : vector<8x128xf32>
    %233 = arith.divf %231, %232 : vector<8x128xf32>
    %234 = math.tanh %228 : vector<8x128xf32>
    %c96_i32_72 = arith.constant 96 : i32
    %235 = tpu.dynamic_rotate %233 by %c96_i32_72 dim 1 : vector<8x128xf32>, i32 -> vector<8x128xf32>
    %236 = arith.mulf %235, %196 : vector<8x128xf32>
    %c64_i32_73 = arith.constant 64 : i32
    %237 = tpu.dynamic_rotate %234 by %c64_i32_73 dim 1 : vector<8x128xf32>, i32 -> vector<8x128xf32>
    %238 = arith.mulf %233, %237 : vector<8x128xf32>
    %239 = arith.addf %236, %238 : vector<8x128xf32>
    %c32_i32_74 = arith.constant 32 : i32
    %240 = tpu.dynamic_rotate %233 by %c32_i32_74 dim 1 : vector<8x128xf32>, i32 -> vector<8x128xf32>
    %241 = math.tanh %239 : vector<8x128xf32>
    %242 = arith.mulf %240, %241 : vector<8x128xf32>
    %c5_i32 = arith.constant 5 : i32
    %243 = vector.broadcast %c5_i32 : i32 to vector<8x1xi32>
    %244 = arith.cmpi eq, %3, %243 : vector<8x1xi32>
    %245 = vector.shape_cast %244 : vector<8x1xi1> to vector<8x1xi1>
    %246 = vector.broadcast %245 : vector<8x1xi1> to vector<8x128xi1>
    %247 = arith.select %246, %242, %204 : vector<8x128xi1>, vector<8x128xf32>
    %248 = vector.extract_strided_slice %31 {offsets = [40, 0], sizes = [8, 128], strides = [1, 1]} : vector<64x128xf32> to vector<8x128xf32>
    %249 = arith.truncf %222 : vector<8x128xf32> to vector<8x128xbf16>
    %cst_75 = arith.constant dense<0.000000e+00> : vector<8x128xf32>
    %250 = tpu.matmul %249, %6, %cst_75 {dimension_numbers = #tpu.dot_dimension_numbers<[1], [0], [0], [1], [0, 0, 1, 1], [], []>} : vector<8x128xbf16>, vector<128x128xbf16>, vector<8x128xf32> -> vector<8x128xf32>
    %251 = arith.addf %248, %250 : vector<8x128xf32>
    %252 = arith.negf %251 : vector<8x128xf32>
    %253 = math.exp %252 : vector<8x128xf32>
    %cst_76 = arith.constant 1.000000e+00 : f32
    %254 = vector.broadcast %cst_76 : f32 to vector<8x128xf32>
    %255 = arith.addf %254, %253 : vector<8x128xf32>
    %256 = arith.divf %254, %255 : vector<8x128xf32>
    %257 = math.tanh %251 : vector<8x128xf32>
    %c96_i32_77 = arith.constant 96 : i32
    %258 = tpu.dynamic_rotate %256 by %c96_i32_77 dim 1 : vector<8x128xf32>, i32 -> vector<8x128xf32>
    %259 = arith.mulf %258, %219 : vector<8x128xf32>
    %c64_i32_78 = arith.constant 64 : i32
    %260 = tpu.dynamic_rotate %257 by %c64_i32_78 dim 1 : vector<8x128xf32>, i32 -> vector<8x128xf32>
    %261 = arith.mulf %256, %260 : vector<8x128xf32>
    %262 = arith.addf %259, %261 : vector<8x128xf32>
    %c32_i32_79 = arith.constant 32 : i32
    %263 = tpu.dynamic_rotate %256 by %c32_i32_79 dim 1 : vector<8x128xf32>, i32 -> vector<8x128xf32>
    %264 = math.tanh %262 : vector<8x128xf32>
    %265 = arith.mulf %263, %264 : vector<8x128xf32>
    %266 = arith.truncf %265 : vector<8x128xf32> to vector<8x128xbf16>
    %cst_80 = arith.constant dense<0.000000e+00> : vector<8x128xf32>
    %267 = tpu.matmul %266, %8, %cst_80 {dimension_numbers = #tpu.dot_dimension_numbers<[1], [0], [0], [1], [0, 0, 1, 1], [], []>} : vector<8x128xbf16>, vector<128x128xbf16>, vector<8x128xf32> -> vector<8x128xf32>
    %268 = arith.truncf %242 : vector<8x128xf32> to vector<8x128xbf16>
    %cst_81 = arith.constant dense<0.000000e+00> : vector<8x128xf32>
    %269 = tpu.matmul %268, %10, %cst_81 {dimension_numbers = #tpu.dot_dimension_numbers<[1], [0], [0], [1], [0, 0, 1, 1], [], []>} : vector<8x128xbf16>, vector<128x128xbf16>, vector<8x128xf32> -> vector<8x128xf32>
    %270 = arith.addf %267, %269 : vector<8x128xf32>
    %271 = arith.addf %270, %14 : vector<8x128xf32>
    %272 = arith.negf %271 : vector<8x128xf32>
    %273 = math.exp %272 : vector<8x128xf32>
    %cst_82 = arith.constant 1.000000e+00 : f32
    %274 = vector.broadcast %cst_82 : f32 to vector<8x128xf32>
    %275 = arith.addf %274, %273 : vector<8x128xf32>
    %276 = arith.divf %274, %275 : vector<8x128xf32>
    %277 = math.tanh %271 : vector<8x128xf32>
    %c96_i32_83 = arith.constant 96 : i32
    %278 = tpu.dynamic_rotate %276 by %c96_i32_83 dim 1 : vector<8x128xf32>, i32 -> vector<8x128xf32>
    %279 = arith.mulf %278, %239 : vector<8x128xf32>
    %c64_i32_84 = arith.constant 64 : i32
    %280 = tpu.dynamic_rotate %277 by %c64_i32_84 dim 1 : vector<8x128xf32>, i32 -> vector<8x128xf32>
    %281 = arith.mulf %276, %280 : vector<8x128xf32>
    %282 = arith.addf %279, %281 : vector<8x128xf32>
    %c32_i32_85 = arith.constant 32 : i32
    %283 = tpu.dynamic_rotate %276 by %c32_i32_85 dim 1 : vector<8x128xf32>, i32 -> vector<8x128xf32>
    %284 = math.tanh %282 : vector<8x128xf32>
    %285 = arith.mulf %283, %284 : vector<8x128xf32>
    %c6_i32 = arith.constant 6 : i32
    %286 = vector.broadcast %c6_i32 : i32 to vector<8x1xi32>
    %287 = arith.cmpi eq, %3, %286 : vector<8x1xi32>
    %288 = vector.shape_cast %287 : vector<8x1xi1> to vector<8x1xi1>
    %289 = vector.broadcast %288 : vector<8x1xi1> to vector<8x128xi1>
    %290 = arith.select %289, %285, %247 : vector<8x128xi1>, vector<8x128xf32>
    %291 = vector.extract_strided_slice %31 {offsets = [48, 0], sizes = [8, 128], strides = [1, 1]} : vector<64x128xf32> to vector<8x128xf32>
    %292 = arith.truncf %265 : vector<8x128xf32> to vector<8x128xbf16>
    %cst_86 = arith.constant dense<0.000000e+00> : vector<8x128xf32>
    %293 = tpu.matmul %292, %6, %cst_86 {dimension_numbers = #tpu.dot_dimension_numbers<[1], [0], [0], [1], [0, 0, 1, 1], [], []>} : vector<8x128xbf16>, vector<128x128xbf16>, vector<8x128xf32> -> vector<8x128xf32>
    %294 = arith.addf %291, %293 : vector<8x128xf32>
    %295 = arith.negf %294 : vector<8x128xf32>
    %296 = math.exp %295 : vector<8x128xf32>
    %cst_87 = arith.constant 1.000000e+00 : f32
    %297 = vector.broadcast %cst_87 : f32 to vector<8x128xf32>
    %298 = arith.addf %297, %296 : vector<8x128xf32>
    %299 = arith.divf %297, %298 : vector<8x128xf32>
    %300 = math.tanh %294 : vector<8x128xf32>
    %c96_i32_88 = arith.constant 96 : i32
    %301 = tpu.dynamic_rotate %299 by %c96_i32_88 dim 1 : vector<8x128xf32>, i32 -> vector<8x128xf32>
    %302 = arith.mulf %301, %262 : vector<8x128xf32>
    %c64_i32_89 = arith.constant 64 : i32
    %303 = tpu.dynamic_rotate %300 by %c64_i32_89 dim 1 : vector<8x128xf32>, i32 -> vector<8x128xf32>
    %304 = arith.mulf %299, %303 : vector<8x128xf32>
    %305 = arith.addf %302, %304 : vector<8x128xf32>
    %c32_i32_90 = arith.constant 32 : i32
    %306 = tpu.dynamic_rotate %299 by %c32_i32_90 dim 1 : vector<8x128xf32>, i32 -> vector<8x128xf32>
    %307 = math.tanh %305 : vector<8x128xf32>
    %308 = arith.mulf %306, %307 : vector<8x128xf32>
    %309 = arith.truncf %308 : vector<8x128xf32> to vector<8x128xbf16>
    %cst_91 = arith.constant dense<0.000000e+00> : vector<8x128xf32>
    %310 = tpu.matmul %309, %8, %cst_91 {dimension_numbers = #tpu.dot_dimension_numbers<[1], [0], [0], [1], [0, 0, 1, 1], [], []>} : vector<8x128xbf16>, vector<128x128xbf16>, vector<8x128xf32> -> vector<8x128xf32>
    %311 = arith.truncf %285 : vector<8x128xf32> to vector<8x128xbf16>
    %cst_92 = arith.constant dense<0.000000e+00> : vector<8x128xf32>
    %312 = tpu.matmul %311, %10, %cst_92 {dimension_numbers = #tpu.dot_dimension_numbers<[1], [0], [0], [1], [0, 0, 1, 1], [], []>} : vector<8x128xbf16>, vector<128x128xbf16>, vector<8x128xf32> -> vector<8x128xf32>
    %313 = arith.addf %310, %312 : vector<8x128xf32>
    %314 = arith.addf %313, %14 : vector<8x128xf32>
    %315 = arith.negf %314 : vector<8x128xf32>
    %316 = math.exp %315 : vector<8x128xf32>
    %cst_93 = arith.constant 1.000000e+00 : f32
    %317 = vector.broadcast %cst_93 : f32 to vector<8x128xf32>
    %318 = arith.addf %317, %316 : vector<8x128xf32>
    %319 = arith.divf %317, %318 : vector<8x128xf32>
    %320 = math.tanh %314 : vector<8x128xf32>
    %c96_i32_94 = arith.constant 96 : i32
    %321 = tpu.dynamic_rotate %319 by %c96_i32_94 dim 1 : vector<8x128xf32>, i32 -> vector<8x128xf32>
    %322 = arith.mulf %321, %282 : vector<8x128xf32>
    %c64_i32_95 = arith.constant 64 : i32
    %323 = tpu.dynamic_rotate %320 by %c64_i32_95 dim 1 : vector<8x128xf32>, i32 -> vector<8x128xf32>
    %324 = arith.mulf %319, %323 : vector<8x128xf32>
    %325 = arith.addf %322, %324 : vector<8x128xf32>
    %c32_i32_96 = arith.constant 32 : i32
    %326 = tpu.dynamic_rotate %319 by %c32_i32_96 dim 1 : vector<8x128xf32>, i32 -> vector<8x128xf32>
    %327 = math.tanh %325 : vector<8x128xf32>
    %328 = arith.mulf %326, %327 : vector<8x128xf32>
    %c7_i32 = arith.constant 7 : i32
    %329 = vector.broadcast %c7_i32 : i32 to vector<8x1xi32>
    %330 = arith.cmpi eq, %3, %329 : vector<8x1xi32>
    %331 = vector.shape_cast %330 : vector<8x1xi1> to vector<8x1xi1>
    %332 = vector.broadcast %331 : vector<8x1xi1> to vector<8x128xi1>
    %333 = arith.select %332, %328, %290 : vector<8x128xi1>, vector<8x128xf32>
    %334 = vector.extract_strided_slice %31 {offsets = [56, 0], sizes = [8, 128], strides = [1, 1]} : vector<64x128xf32> to vector<8x128xf32>
    %335 = arith.truncf %308 : vector<8x128xf32> to vector<8x128xbf16>
    %cst_97 = arith.constant dense<0.000000e+00> : vector<8x128xf32>
    %336 = tpu.matmul %335, %6, %cst_97 {dimension_numbers = #tpu.dot_dimension_numbers<[1], [0], [0], [1], [0, 0, 1, 1], [], []>} : vector<8x128xbf16>, vector<128x128xbf16>, vector<8x128xf32> -> vector<8x128xf32>
    %337 = arith.addf %334, %336 : vector<8x128xf32>
    %338 = arith.negf %337 : vector<8x128xf32>
    %339 = math.exp %338 : vector<8x128xf32>
    %cst_98 = arith.constant 1.000000e+00 : f32
    %340 = vector.broadcast %cst_98 : f32 to vector<8x128xf32>
    %341 = arith.addf %340, %339 : vector<8x128xf32>
    %342 = arith.divf %340, %341 : vector<8x128xf32>
    %343 = math.tanh %337 : vector<8x128xf32>
    %c96_i32_99 = arith.constant 96 : i32
    %344 = tpu.dynamic_rotate %342 by %c96_i32_99 dim 1 : vector<8x128xf32>, i32 -> vector<8x128xf32>
    %345 = arith.mulf %344, %305 : vector<8x128xf32>
    %c64_i32_100 = arith.constant 64 : i32
    %346 = tpu.dynamic_rotate %343 by %c64_i32_100 dim 1 : vector<8x128xf32>, i32 -> vector<8x128xf32>
    %347 = arith.mulf %342, %346 : vector<8x128xf32>
    %348 = arith.addf %345, %347 : vector<8x128xf32>
    %c32_i32_101 = arith.constant 32 : i32
    %349 = tpu.dynamic_rotate %342 by %c32_i32_101 dim 1 : vector<8x128xf32>, i32 -> vector<8x128xf32>
    %350 = math.tanh %348 : vector<8x128xf32>
    %351 = arith.mulf %349, %350 : vector<8x128xf32>
    %352 = arith.truncf %351 : vector<8x128xf32> to vector<8x128xbf16>
    %cst_102 = arith.constant dense<0.000000e+00> : vector<8x128xf32>
    %353 = tpu.matmul %352, %8, %cst_102 {dimension_numbers = #tpu.dot_dimension_numbers<[1], [0], [0], [1], [0, 0, 1, 1], [], []>} : vector<8x128xbf16>, vector<128x128xbf16>, vector<8x128xf32> -> vector<8x128xf32>
    %354 = arith.truncf %328 : vector<8x128xf32> to vector<8x128xbf16>
    %cst_103 = arith.constant dense<0.000000e+00> : vector<8x128xf32>
    %355 = tpu.matmul %354, %10, %cst_103 {dimension_numbers = #tpu.dot_dimension_numbers<[1], [0], [0], [1], [0, 0, 1, 1], [], []>} : vector<8x128xbf16>, vector<128x128xbf16>, vector<8x128xf32> -> vector<8x128xf32>
    %356 = arith.addf %353, %355 : vector<8x128xf32>
    %357 = arith.addf %356, %14 : vector<8x128xf32>
    %358 = arith.negf %357 : vector<8x128xf32>
    %359 = math.exp %358 : vector<8x128xf32>
    %cst_104 = arith.constant 1.000000e+00 : f32
    %360 = vector.broadcast %cst_104 : f32 to vector<8x128xf32>
    %361 = arith.addf %360, %359 : vector<8x128xf32>
    %362 = arith.divf %360, %361 : vector<8x128xf32>
    %363 = math.tanh %357 : vector<8x128xf32>
    %c96_i32_105 = arith.constant 96 : i32
    %364 = tpu.dynamic_rotate %362 by %c96_i32_105 dim 1 : vector<8x128xf32>, i32 -> vector<8x128xf32>
    %365 = arith.mulf %364, %325 : vector<8x128xf32>
    %c64_i32_106 = arith.constant 64 : i32
    %366 = tpu.dynamic_rotate %363 by %c64_i32_106 dim 1 : vector<8x128xf32>, i32 -> vector<8x128xf32>
    %367 = arith.mulf %362, %366 : vector<8x128xf32>
    %368 = arith.addf %365, %367 : vector<8x128xf32>
    %c32_i32_107 = arith.constant 32 : i32
    %369 = tpu.dynamic_rotate %362 by %c32_i32_107 dim 1 : vector<8x128xf32>, i32 -> vector<8x128xf32>
    %370 = math.tanh %368 : vector<8x128xf32>
    %371 = arith.mulf %369, %370 : vector<8x128xf32>
    %c8_i32 = arith.constant 8 : i32
    %372 = vector.broadcast %c8_i32 : i32 to vector<8x1xi32>
    %373 = arith.cmpi eq, %3, %372 : vector<8x1xi32>
    %374 = vector.shape_cast %373 : vector<8x1xi1> to vector<8x1xi1>
    %375 = vector.broadcast %374 : vector<8x1xi1> to vector<8x128xi1>
    %376 = arith.select %375, %371, %333 : vector<8x128xi1>, vector<8x128xf32>
    %cst_108 = arith.constant dense<0.000000e+00> : vector<8x32xf32>
    %377 = tpu.matmul %376, %16, %cst_108 {dimension_numbers = #tpu.dot_dimension_numbers<[1], [0], [0], [1], [0, 0, 1, 1], [], []>} : vector<8x128xf32>, vector<128x32xf32>, vector<8x32xf32> -> vector<8x32xf32>
    %378 = vector.broadcast %19 : vector<1x32xf32> to vector<8x32xf32>
    %379 = arith.addf %377, %378 : vector<8x32xf32>
    %380 = math.tanh %379 : vector<8x32xf32>
    %c0_109 = arith.constant 0 : index
    %c0_110 = arith.constant 0 : index
    %c0_111 = arith.constant 0 : index
    %381 = vector.load %arg2[%c0_109, %c0_110, %c0_111] : memref<1x8x64xf32, #tpu.memory_space<vmem>>, vector<1x8x64xf32>
    %382 = vector.shape_cast %381 : vector<1x8x64xf32> to vector<8x64xf32>
    %cst_112 = arith.constant dense<0.000000e+00> : vector<8x32xf32>
    %383 = tpu.matmul %382, %17, %cst_112 {dimension_numbers = #tpu.dot_dimension_numbers<[1], [0], [0], [1], [0, 0, 1, 1], [], []>} : vector<8x64xf32>, vector<64x32xf32>, vector<8x32xf32> -> vector<8x32xf32>
    %384 = vector.broadcast %20 : vector<1x32xf32> to vector<8x32xf32>
    %385 = arith.addf %383, %384 : vector<8x32xf32>
    %386 = math.tanh %385 : vector<8x32xf32>
    %387 = arith.mulf %380, %386 : vector<8x32xf32>
    %cst_113 = arith.constant dense<0.000000e+00> : vector<8x32xf32>
    %388 = tpu.matmul %387, %18, %cst_113 {dimension_numbers = #tpu.dot_dimension_numbers<[1], [0], [0], [1], [0, 0, 1, 1], [], []>} : vector<8x32xf32>, vector<32x32xf32>, vector<8x32xf32> -> vector<8x32xf32>
    %389 = vector.broadcast %21 : vector<1x32xf32> to vector<8x32xf32>
    %390 = arith.addf %388, %389 : vector<8x32xf32>
    %391 = vector.extract_strided_slice %390 {offsets = [0, 0], sizes = [8, 16], strides = [1, 1]} : vector<8x32xf32> to vector<8x16xf32>
    %c0_114 = arith.constant 0 : index
    %c0_115 = arith.constant 0 : index
    %c0_116 = arith.constant 0 : index
    %392 = vector.load %arg5[%c0_114, %c0_115, %c0_116] : memref<1x8x16xf32, #tpu.memory_space<vmem>>, vector<1x8x16xf32>
    %393 = vector.shape_cast %392 : vector<1x8x16xf32> to vector<8x16xf32>
    %394 = vector.shape_cast %391 : vector<8x16xf32> to vector<1x8x16xf32>
    tpu.vector_store %arg5[%c0_114, %c0_115, %c0_116], %394 {strides = array<i32>} : memref<1x8x16xf32, #tpu.memory_space<vmem>>, vector<1x8x16xf32>,
    return
  }
  func.func @transform_0(%arg0: i32) -> (i32, i32, i32) {
    %c0_i32 = arith.constant 0 : i32
    %c0_i32_0 = arith.constant 0 : i32
    %c0_i32_1 = arith.constant 0 : i32
    return %arg0, %c0_i32, %c0_i32_0 : i32, i32, i32
  }
  func.func @transform_1(%arg0: i32) -> (i32, i32, i32) {
    %c0_i32 = arith.constant 0 : i32
    %c0_i32_0 = arith.constant 0 : i32
    %c0_i32_1 = arith.constant 0 : i32
    return %arg0, %c0_i32, %c0_i32_0 : i32, i32, i32
  }
  func.func @transform_2(%arg0: i32) -> (i32, i32) {
    %c0_i32 = arith.constant 0 : i32
    %c0_i32_0 = arith.constant 0 : i32
    %c0_i32_1 = arith.constant 0 : i32
    return %c0_i32, %c0_i32_0 : i32, i32
  }
  func.func @transform_3(%arg0: i32) -> (i32, i32) {
    %c0_i32 = arith.constant 0 : i32
    %c0_i32_0 = arith.constant 0 : i32
    %c0_i32_1 = arith.constant 0 : i32
    return %c0_i32, %c0_i32_0 : i32, i32
  }
  func.func @transform_4(%arg0: i32) -> (i32, i32, i32) {
    %c0_i32 = arith.constant 0 : i32
    %c0_i32_0 = arith.constant 0 : i32
    %c0_i32_1 = arith.constant 0 : i32
    return %arg0, %c0_i32, %c0_i32_0 : i32, i32, i32
  }
}

</mosaic_0001>

<llo_original>
// kernel: vqa_forward.1
$region0: #{vqa_forward.1}
  #allocation0 [shape = 'u32[]', space=smem, size = 0x4, offset = 0x4, fixed_abs, tag = 'smem constant byte address 0x4 - core index']
  #allocation1 [shape = 'u32[144,128]{1,0:T(1,128)}', space=vmem, size = 0x12000, scoped, tag = 'internal scratch']
  %s0 = inlined_call_operand.vmem [shape: s32[1,72,1], index: 0, kind: input, shape index: {}]
  %s1 = inlined_call_operand.vmem [shape: f32[1,8,64], index: 1, kind: input, shape index: {}]
  %s2 = inlined_call_operand.vmem [shape: f32[418,128], index: 2, kind: input, shape index: {}]
  %s3 = inlined_call_operand.vmem [shape: f32[259,32], index: 3, kind: input, shape index: {}]
  %s4 = inlined_call_operand.vmem [shape: f32[1,8,16], index: 4, kind: output, shape index: {}]
  %s5 = sld [smem:[#allocation0]]
  $region26: #{vqa_forward.1} parent=0
    _
  %s7 = ssub.s32 1, %s5
  %s8 = scalar_select 0, %s7, %s5
  // Predicated region
  $region2: #{vqa_forward.1} parent=0 // pred_check
    _
  $region3: #{vqa_forward.1} parent=0 // pred_check_branch
    %10 = sbr.rel (0) target = $region5
  $region4: #{vqa_forward.1} parent=0 // pred_region
    _
  $region5: #{vqa_forward.1} parent=0 // pred_fallthru
    _
  // Predicated region
  $region6: #{vqa_forward.1} parent=0 // pred_check
    _
  $region7: #{vqa_forward.1} parent=0 // pred_check_branch
    %12 = sbr.rel (0) target = $region9
  $region8: #{vqa_forward.1} parent=0 // pred_region
    _
  $region9: #{vqa_forward.1} parent=0 // pred_fallthru
    _
  // Predicated region
  $region10: #{vqa_forward.1} parent=0 // pred_check
    _
  $region11: #{vqa_forward.1} parent=0 // pred_check_branch
    %14 = sbr.rel (0) target = $region13
  $region12: #{vqa_forward.1} parent=0 // pred_region
    _
  $region13: #{vqa_forward.1} parent=0 // pred_fallthru
    _
  // Predicated region
  $region14: #{vqa_forward.1} parent=0 // pred_check
    _
  $region15: #{vqa_forward.1} parent=0 // pred_check_branch
    %16 = sbr.rel (0) target = $region17
  $region16: #{vqa_forward.1} parent=0 // pred_region
    _
  $region17: #{vqa_forward.1} parent=0 // pred_fallthru
    _
  %v18 = vld [vmem:[%s0] sm:$0xff]
  %v19 = vld [vmem:[%s0 + $0x8] sm:$0xff]
  %v20 = vld [vmem:[%s0 + $0x10] sm:$0xff]
  %v21 = vld [vmem:[%s0 + $0x18] sm:$0xff]
  %v22 = vld [vmem:[%s0 + $0x20] sm:$0xff]
  %v23 = vld [vmem:[%s0 + $0x28] sm:$0xff]
  %v24 = vld [vmem:[%s0 + $0x30] sm:$0xff]
  %v25 = vld [vmem:[%s0 + $0x38] sm:$0xff]
  %v26 = vld [vmem:[%s0 + $0x40] sm:$0xff]
  %v27 = vld [vmem:[%s2] sm:$0xff]
  %v28 = vld [vmem:[%s2 + $0x8] sm:$0xff]
  %v29 = vld [vmem:[%s2 + $0x10] sm:$0xff]
  %v30 = vld [vmem:[%s2 + $0x18] sm:$0xff]
  %v31 = vld [vmem:[%s2 + $0x20] sm:$0xff]
  %v32 = vld [vmem:[%s2 + $0x28] sm:$0xff]
  %v33 = vld [vmem:[%s2 + $0x30] sm:$0xff]
  %v34 = vld [vmem:[%s2 + $0x38] sm:$0xff]
  %v35 = vld [vmem:[%s2 + $0x40] sm:$0xff]
  %v36 = vld [vmem:[%s2 + $0x48] sm:$0xff]
  %v37 = vld [vmem:[%s2 + $0x50] sm:$0xff]
  %v38 = vld [vmem:[%s2 + $0x58] sm:$0xff]
  %v39 = vld [vmem:[%s2 + $0x60] sm:$0xff]
  %v40 = vld [vmem:[%s2 + $0x68] sm:$0xff]
  %v41 = vld [vmem:[%s2 + $0x70] sm:$0xff]
  %v42 = vld [vmem:[%s2 + $0x78] sm:$0xff]
  %v43 = vld [vmem:[%s2 + $0x80] sm:$0xff]
  %v44 = vld [vmem:[%s2 + $0x88] sm:$0xff]
  %v45 = vld [vmem:[%s2 + $0x90] sm:$0xff]
  %v46 = vld [vmem:[%s2 + $0x98] sm:$0xff]
  %v47 = vpack.c.bf16 %v32, %v31
  %v48 = vpack.c.bf16 %v34, %v33
  %v49 = vpack.c.bf16 %v36, %v35
  %v50 = vpack.c.bf16 %v38, %v37
  %v51 = vpack.c.bf16 %v40, %v39
  %v52 = vpack.c.bf16 %v42, %v41
  %v53 = vpack.c.bf16 %v44, %v43
  %v54 = vpack.c.bf16 %v46, %v45
  %v55 = vld [vmem:[%s2 + $0xa0] sm:$0xff]
  %v56 = vld [vmem:[%s2 + $0xa8] sm:$0xff]
  %v57 = vld [vmem:[%s2 + $0xb0] sm:$0xff]
  %v58 = vld [vmem:[%s2 + $0xb8] sm:$0xff]
  %v59 = vld [vmem:[%s2 + $0xc0] sm:$0xff]
  %v60 = vld [vmem:[%s2 + $0xc8] sm:$0xff]
  %v61 = vld [vmem:[%s2 + $0xd0] sm:$0xff]
  %v62 = vld [vmem:[%s2 + $0xd8] sm:$0xff]
  %v63 = vld [vmem:[%s2 + $0xe0] sm:$0xff]
  %v64 = vld [vmem:[%s2 + $0xe8] sm:$0xff]
  %v65 = vld [vmem:[%s2 + $0xf0] sm:$0xff]
  %v66 = vld [vmem:[%s2 + $0xf8] sm:$0xff]
  %v67 = vld [vmem:[%s2 + $0x100] sm:$0xff]
  %v68 = vld [vmem:[%s2 + $0x108] sm:$0xff]
  %v69 = vld [vmem:[%s2 + $0x110] sm:$0xff]
  %v70 = vld [vmem:[%s2 + $0x118] sm:$0xff]
  %v71 = vpack.c.bf16 %v56, %v55
  %v72 = vpack.c.bf16 %v58, %v57
  %v73 = vpack.c.bf16 %v60, %v59
  %v74 = vpack.c.bf16 %v62, %v61
  %v75 = vpack.c.bf16 %v64, %v63
  %v76 = vpack.c.bf16 %v66, %v65
  %v77 = vpack.c.bf16 %v68, %v67
  %v78 = vpack.c.bf16 %v70, %v69
  %v79 = vld [vmem:[%s2 + $0x120] sm:$0xff]
  %v80 = vld [vmem:[%s2 + $0x128] sm:$0xff]
  %v81 = vld [vmem:[%s2 + $0x130] sm:$0xff]
  %v82 = vld [vmem:[%s2 + $0x138] sm:$0xff]
  %v83 = vld [vmem:[%s2 + $0x140] sm:$0xff]
  %v84 = vld [vmem:[%s2 + $0x148] sm:$0xff]
  %v85 = vld [vmem:[%s2 + $0x150] sm:$0xff]
  %v86 = vld [vmem:[%s2 + $0x158] sm:$0xff]
  %v87 = vld [vmem:[%s2 + $0x160] sm:$0xff]
  %v88 = vld [vmem:[%s2 + $0x168] sm:$0xff]
  %v89 = vld [vmem:[%s2 + $0x170] sm:$0xff]
  %v90 = vld [vmem:[%s2 + $0x178] sm:$0xff]
  %v91 = vld [vmem:[%s2 + $0x180] sm:$0xff]
  %v92 = vld [vmem:[%s2 + $0x188] sm:$0xff]
  %v93 = vld [vmem:[%s2 + $0x190] sm:$0xff]
  %v94 = vld [vmem:[%s2 + $0x198] sm:$0xff]
  %v95 = vpack.c.bf16 %v80, %v79
  %v96 = vpack.c.bf16 %v82, %v81
  %v97 = vpack.c.bf16 %v84, %v83
  %v98 = vpack.c.bf16 %v86, %v85
  %v99 = vpack.c.bf16 %v88, %v87
  %v100 = vpack.c.bf16 %v90, %v89
  %v101 = vpack.c.bf16 %v92, %v91
  %v102 = vpack.c.bf16 %v94, %v93
  %v103 = vld [vmem:[%s2 + $0x1a0] sm:$0x1]
  %v104 = vld [vmem:[%s2 + $0x1a1] sm:$0x1]
  %v105 = vlaneseq
  %v106 = vshrl.u32 %v105, 7
  %v107 = vsub.s32 0, %v106
  %v108 = vrot.slane %v104, %v107
  %v109 = vld [vmem:[%s3] sm:$0xff]
  %v110 = vld [vmem:[%s3 + $0x8] sm:$0xff]
  %v111 = vld [vmem:[%s3 + $0x10] sm:$0xff]
  %v112 = vld [vmem:[%s3 + $0x18] sm:$0xff]
  %v113 = vld [vmem:[%s3 + $0x20] sm:$0xff]
  %v114 = vld [vmem:[%s3 + $0x28] sm:$0xff]
  %v115 = vld [vmem:[%s3 + $0x30] sm:$0xff]
  %v116 = vld [vmem:[%s3 + $0x38] sm:$0xff]
  %v117 = vld [vmem:[%s3 + $0x40] sm:$0xff]
  %v118 = vld [vmem:[%s3 + $0x48] sm:$0xff]
  %v119 = vld [vmem:[%s3 + $0x50] sm:$0xff]
  %v120 = vld [vmem:[%s3 + $0x58] sm:$0xff]
  %v121 = vld [vmem:[%s3 + $0x60] sm:$0xff]
  %v122 = vld [vmem:[%s3 + $0x68] sm:$0xff]
  %v123 = vld [vmem:[%s3 + $0x70] sm:$0xff]
  %v124 = vld [vmem:[%s3 + $0x78] sm:$0xff]
  %v125 = vld [vmem:[%s3 + $0x80] sm:$0xff]
  %v126 = vld [vmem:[%s3 + $0x88] sm:$0xff]
  %v127 = vld [vmem:[%s3 + $0x90] sm:$0xff]
  %v128 = vld [vmem:[%s3 + $0x98] sm:$0xff]
  %v129 = vld [vmem:[%s3 + $0xa0] sm:$0xff]
  %v130 = vld [vmem:[%s3 + $0xa8] sm:$0xff]
  %v131 = vld [vmem:[%s3 + $0xb0] sm:$0xff]
  %v132 = vld [vmem:[%s3 + $0xb8] sm:$0xff]
  %v133 = vld [vmem:[%s3 + $0xc0] sm:$0xff]
  %v134 = vld [vmem:[%s3 + $0xc8] sm:$0xff]
  %v135 = vld [vmem:[%s3 + $0xd0] sm:$0xff]
  %v136 = vld [vmem:[%s3 + $0xd8] sm:$0xff]
  %v137 = vld [vmem:[%s3 + $0xe0] sm:$0xff]
  %v138 = vld [vmem:[%s3 + $0xe8] sm:$0xff]
  %v139 = vld [vmem:[%s3 + $0xf0] sm:$0xff]
  %v140 = vld [vmem:[%s3 + $0xf8] sm:$0xff]
  %v141 = vld [vmem:[%s3 + $0x100] sm:$0x1]
  %v142 = vld [vmem:[%s3 + $0x101] sm:$0x1]
  %v143 = vld [vmem:[%s3 + $0x102] sm:$0x1]
  %v144 = vlaneseq
  %v145 = vand.u32 %v144, 127
  %146 = vset.pattern.permute.xlu0 0
  %147 = vperm.xlu0 %146, %v18
  %v148 = vpop.permute.xlu0 %147
  %149 = vset.pattern.permute.xlu0 0
  %150 = vperm.xlu0 %149, %v19
  %v151 = vpop.permute.xlu0 %150
  %152 = vset.pattern.permute.xlu0 0
  %153 = vperm.xlu0 %152, %v20
  %v154 = vpop.permute.xlu0 %153
  %155 = vset.pattern.permute.xlu0 0
  %156 = vperm.xlu0 %155, %v21
  %v157 = vpop.permute.xlu0 %156
  %158 = vset.pattern.permute.xlu0 0
  %159 = vperm.xlu0 %158, %v22
  %v160 = vpop.permute.xlu0 %159
  %161 = vset.pattern.permute.xlu0 0
  %162 = vperm.xlu0 %161, %v23
  %v163 = vpop.permute.xlu0 %162
  %164 = vset.pattern.permute.xlu0 0
  %165 = vperm.xlu0 %164, %v24
  %v166 = vpop.permute.xlu0 %165
  %167 = vset.pattern.permute.xlu0 0
  %168 = vperm.xlu0 %167, %v25
  %v169 = vpop.permute.xlu0 %168
  %vm170 = vcmp.eq.s32.totalorder %v148, %v145
  %vm171 = vcmp.eq.s32.totalorder %v151, %v145
  %vm172 = vcmp.eq.s32.totalorder %v154, %v145
  %vm173 = vcmp.eq.s32.totalorder %v157, %v145
  %vm174 = vcmp.eq.s32.totalorder %v160, %v145
  %vm175 = vcmp.eq.s32.totalorder %v163, %v145
  %vm176 = vcmp.eq.s32.totalorder %v166, %v145
  %vm177 = vcmp.eq.s32.totalorder %v169, %v145
  %v178 = vsel %vm170, 1, 0
  %v179 = vsel %vm171, 1, 0
  %v180 = vsel %vm172, 1, 0
  %v181 = vsel %vm173, 1, 0
  %v182 = vsel %vm174, 1, 0
  %v183 = vsel %vm175, 1, 0
  %v184 = vsel %vm176, 1, 0
  %v185 = vsel %vm177, 1, 0
  %v186 = vcvt.s32.f32 %v178
  %v187 = vcvt.s32.f32 %v179
  %v188 = vcvt.s32.f32 %v180
  %v189 = vcvt.s32.f32 %v181
  %v190 = vcvt.s32.f32 %v182
  %v191 = vcvt.s32.f32 %v183
  %v192 = vcvt.s32.f32 %v184
  %v193 = vcvt.s32.f32 %v185
  %vm194 = vcmask 261120
  %v196 = vsel %vm194, %v186, 0
  %v199 = vsel %vm194, %v187, 0
  %v202 = vsel %vm194, %v188, 0
  %v205 = vsel %vm194, %v189, 0
  %v208 = vsel %vm194, %v190, 0
  %v211 = vsel %vm194, %v191, 0
  %v214 = vsel %vm194, %v192, 0
  %v217 = vsel %vm194, %v193, 0
  %219 = vmatprep.subr.mxu0 0.0
  %220 = vmatpush1.msra.mxu0 %v109
  %221 = vmatprep.subr.mxu0 0.0
  %222 = vmatpush1.msra.mxu0 %v110
  %223 = vmatprep.subr.mxu0 0.0
  %224 = vmatpush1.msra.mxu0 %v111
  %225 = vmatprep.subr.mxu0 0.0
  %226 = vmatpush1.msra.mxu0 %v112
  %227 = vmatprep.subr.mxu0 0.0
  %228 = vmatpush1.msra.mxu0 0.0
  %229 = vmatprep.subr.mxu0 0.0
  %230 = vmatpush1.msra.mxu0 0.0
  %231 = vmatprep.subr.mxu0 0.0
  %232 = vmatpush1.msra.mxu0 0.0
  %233 = vmatprep.subr.mxu0 0.0
  %234 = vmatpush1.msra.mxu0 0.0
  %235 = vmatprep.subr.mxu0 0.0
  %236 = vmatpush1.msra.mxu0 0.0
  %237 = vmatprep.subr.mxu0 0.0
  %238 = vmatpush1.msra.mxu0 0.0
  %239 = vmatprep.subr.mxu0 0.0
  %240 = vmatpush1.msra.mxu0 0.0
  %241 = vmatprep.subr.mxu0 0.0
  %242 = vmatpush1.msra.mxu0 0.0
  %243 = vmatprep.subr.mxu0 0.0
  %244 = vmatpush1.msra.mxu0 0.0
  %245 = vmatprep.subr.mxu0 0.0
  %246 = vmatpush1.msra.mxu0 0.0
  %247 = vmatprep.subr.mxu0 0.0
  %248 = vmatpush1.msra.mxu0 0.0
  %249 = vmatprep.subr.mxu0 0.0
  %250 = vmatpush1.msra.mxu0 0.0
  %251 = vmatprep.subr.mxu0 0.0
  %252 = vmatpush1.msra.mxu0 0.0
  %253 = vmatprep.subr.mxu0 0.0
  %254 = vmatpush1.msra.mxu0 0.0
  %255 = vmatprep.subr.mxu0 0.0
  %256 = vmatpush1.msra.mxu0 0.0
  %257 = vmatprep.subr.mxu0 0.0
  %258 = vmatpush1.msra.mxu0 0.0
  %259 = vmatprep.subr.mxu0 0.0
  %260 = vmatpush1.msra.mxu0 0.0
  %261 = vmatprep.subr.mxu0 0.0
  %262 = vmatpush1.msra.mxu0 0.0
  %263 = vmatprep.subr.mxu0 0.0
  %264 = vmatpush1.msra.mxu0 0.0
  %265 = vmatprep.subr.mxu0 0.0
  %266 = vmatpush1.msra.mxu0 0.0
  %267 = vmatprep.subr.mxu0 0.0
  %268 = vmatpush1.msra.mxu0 0.0
  %269 = vmatprep.subr.mxu0 0.0
  %270 = vmatpush1.msra.mxu0 0.0
  %271 = vmatprep.subr.mxu0 0.0
  %272 = vmatpush1.msra.mxu0 0.0
  %273 = vmatprep.subr.mxu0 0.0
  %274 = vmatpush1.msra.mxu0 0.0
  %275 = vmatprep.subr.mxu0 0.0
  %276 = vmatpush1.msra.mxu0 0.0
  %277 = vmatprep.subr.mxu0 0.0
  %278 = vmatpush1.msra.mxu0 0.0
  %279 = vmatprep.subr.mxu0 0.0
  %280 = vmatpush1.msra.mxu0 0.0
  %281 = vmatprep.subr.mxu0 0.0
  %282 = vmatpush1.msra.mxu0 0.0
  %283 = vmatprep.mubr.f32.mxu0 0.0
  %284 = vmatmul.mubr.f32.gmra.mrb[0].mxu0 %v196
  %v285 = vpop.f32.mrb[0].mxu0
  %v286 = vadd.f32 0.0, %v285
  %v287 = vpop.f32.mrb[0].mxu0
  %288 = vmatprep.mubr.f32.mxu0 0.0
  %289 = vmatmul.mubr.f32.gmra.mrb[0].mxu0 %v199
  %v290 = vpop.f32.mrb[0].mxu0
  %v291 = vadd.f32 0.0, %v290
  %v292 = vpop.f32.mrb[0].mxu0
  %293 = vmatprep.mubr.f32.mxu0 0.0
  %294 = vmatmul.mubr.f32.gmra.mrb[0].mxu0 %v202
  %v295 = vpop.f32.mrb[0].mxu0
  %v296 = vadd.f32 0.0, %v295
  %v297 = vpop.f32.mrb[0].mxu0
  %298 = vmatprep.mubr.f32.mxu0 0.0
  %299 = vmatmul.mubr.f32.gmra.mrb[0].mxu0 %v205
  %v300 = vpop.f32.mrb[0].mxu0
  %v301 = vadd.f32 0.0, %v300
  %v302 = vpop.f32.mrb[0].mxu0
  %303 = vmatprep.mubr.f32.mxu0 0.0
  %304 = vmatmul.mubr.f32.gmra.mrb[0].mxu0 %v208
  %v305 = vpop.f32.mrb[0].mxu0
  %v306 = vadd.f32 0.0, %v305
  %v307 = vpop.f32.mrb[0].mxu0
  %308 = vmatprep.mubr.f32.mxu0 0.0
  %309 = vmatmul.mubr.f32.gmra.mrb[0].mxu0 %v211
  %v310 = vpop.f32.mrb[0].mxu0
  %v311 = vadd.f32 0.0, %v310
  %v312 = vpop.f32.mrb[0].mxu0
  %313 = vmatprep.mubr.f32.mxu0 0.0
  %314 = vmatmul.mubr.f32.gmra.mrb[0].mxu0 %v214
  %v315 = vpop.f32.mrb[0].mxu0
  %v316 = vadd.f32 0.0, %v315
  %v317 = vpop.f32.mrb[0].mxu0
  %318 = vmatprep.mubr.f32.mxu0 0.0
  %319 = vmatmul.mubr.f32.gmra.mrb[0].mxu0 %v217
  %v320 = vpop.f32.mrb[0].mxu0
  %v321 = vadd.f32 0.0, %v320
  %v322 = vpop.f32.mrb[0].mxu0
  %323 = vdwg.mxu0
  %v324 = vtanh.pop %v286
  %v325 = vtanh.pop %v291
  %v326 = vtanh.pop %v296
  %v327 = vtanh.pop %v301
  %v328 = vtanh.pop %v306
  %v329 = vtanh.pop %v311
  %v330 = vtanh.pop %v316
  %v331 = vtanh.pop %v321
  %v332 = vlaneseq
  %v333 = vshrl.u32 %v332, 7
  %v334 = vsub.s32 0, %v333
  %v335 = vrot.slane %v103, %v334
  %v337 = vsel %vm194, %v324, 0
  %v340 = vsel %vm194, %v325, 0
  %v343 = vsel %vm194, %v326, 0
  %v346 = vsel %vm194, %v327, 0
  %v349 = vsel %vm194, %v328, 0
  %v352 = vsel %vm194, %v329, 0
  %v355 = vsel %vm194, %v330, 0
  %v358 = vsel %vm194, %v331, 0
  %360 = vmatprep.subr.mxu0 0.0
  %361 = vmatpush1.msra.mxu0 %v27
  %362 = vmatprep.subr.mxu0 0.0
  %363 = vmatpush1.msra.mxu0 %v28
  %364 = vmatprep.subr.mxu0 0.0
  %365 = vmatpush1.msra.mxu0 %v29
  %366 = vmatprep.subr.mxu0 0.0
  %367 = vmatpush1.msra.mxu0 %v30
  %368 = vmatprep.subr.mxu0 0.0
  %369 = vmatpush1.msra.mxu0 0.0
  %370 = vmatprep.subr.mxu0 0.0
  %371 = vmatpush1.msra.mxu0 0.0
  %372 = vmatprep.subr.mxu0 0.0
  %373 = vmatpush1.msra.mxu0 0.0
  %374 = vmatprep.subr.mxu0 0.0
  %375 = vmatpush1.msra.mxu0 0.0
  %376 = vmatprep.subr.mxu0 0.0
  %377 = vmatpush1.msra.mxu0 0.0
  %378 = vmatprep.subr.mxu0 0.0
  %379 = vmatpush1.msra.mxu0 0.0
  %380 = vmatprep.subr.mxu0 0.0
  %381 = vmatpush1.msra.mxu0 0.0
  %382 = vmatprep.subr.mxu0 0.0
  %383 = vmatpush1.msra.mxu0 0.0
  %384 = vmatprep.subr.mxu0 0.0
  %385 = vmatpush1.msra.mxu0 0.0
  %386 = vmatprep.subr.mxu0 0.0
  %387 = vmatpush1.msra.mxu0 0.0
  %388 = vmatprep.subr.mxu0 0.0
  %389 = vmatpush1.msra.mxu0 0.0
  %390 = vmatprep.subr.mxu0 0.0
  %391 = vmatpush1.msra.mxu0 0.0
  %392 = vmatprep.subr.mxu0 0.0
  %393 = vmatpush1.msra.mxu0 0.0
  %394 = vmatprep.subr.mxu0 0.0
  %395 = vmatpush1.msra.mxu0 0.0
  %396 = vmatprep.subr.mxu0 0.0
  %397 = vmatpush1.msra.mxu0 0.0
  %398 = vmatprep.subr.mxu0 0.0
  %399 = vmatpush1.msra.mxu0 0.0
  %400 = vmatprep.subr.mxu0 0.0
  %401 = vmatpush1.msra.mxu0 0.0
  %402 = vmatprep.subr.mxu0 0.0
  %403 = vmatpush1.msra.mxu0 0.0
  %404 = vmatprep.subr.mxu0 0.0
  %405 = vmatpush1.msra.mxu0 0.0
  %406 = vmatprep.subr.mxu0 0.0
  %407 = vmatpush1.msra.mxu0 0.0
  %408 = vmatprep.subr.mxu0 0.0
  %409 = vmatpush1.msra.mxu0 0.0
  %410 = vmatprep.subr.mxu0 0.0
  %411 = vmatpush1.msra.mxu0 0.0
  %412 = vmatprep.subr.mxu0 0.0
  %413 = vmatpush1.msra.mxu0 0.0
  %414 = vmatprep.subr.mxu0 0.0
  %415 = vmatpush1.msra.mxu0 0.0
  %416 = vmatprep.subr.mxu0 0.0
  %417 = vmatpush1.msra.mxu0 0.0
  %418 = vmatprep.subr.mxu0 0.0
  %419 = vmatpush1.msra.mxu0 0.0
  %420 = vmatprep.subr.mxu0 0.0
  %421 = vmatpush1.msra.mxu0 0.0
  %422 = vmatprep.subr.mxu0 0.0
  %423 = vmatpush1.msra.mxu0 0.0
  %424 = vmatprep.mubr.f32.mxu0 0.0
  %425 = vmatmul.mubr.f32.gmra.mrb[0].mxu0 %v337
  %v426 = vpop.f32.mrb[0].mxu0
  %v427 = vadd.f32 %v335, %v426
  %v428 = vpop.f32.mrb[0].mxu0
  %429 = vmatprep.mubr.f32.mxu0 0.0
  %430 = vmatmul.mubr.f32.gmra.mrb[0].mxu0 %v340
  %v431 = vpop.f32.mrb[0].mxu0
  %v432 = vadd.f32 %v335, %v431
  %v433 = vpop.f32.mrb[0].mxu0
  %434 = vmatprep.mubr.f32.mxu0 0.0
  %435 = vmatmul.mubr.f32.gmra.mrb[0].mxu0 %v343
  %v436 = vpop.f32.mrb[0].mxu0
  %v437 = vadd.f32 %v335, %v436
  %v438 = vpop.f32.mrb[0].mxu0
  %439 = vmatprep.mubr.f32.mxu0 0.0
  %440 = vmatmul.mubr.f32.gmra.mrb[0].mxu0 %v346
  %v441 = vpop.f32.mrb[0].mxu0
  %v442 = vadd.f32 %v335, %v441
  %v443 = vpop.f32.mrb[0].mxu0
  %444 = vmatprep.mubr.f32.mxu0 0.0
  %445 = vmatmul.mubr.f32.gmra.mrb[0].mxu0 %v349
  %v446 = vpop.f32.mrb[0].mxu0
  %v447 = vadd.f32 %v335, %v446
  %v448 = vpop.f32.mrb[0].mxu0
  %449 = vmatprep.mubr.f32.mxu0 0.0
  %450 = vmatmul.mubr.f32.gmra.mrb[0].mxu0 %v352
  %v451 = vpop.f32.mrb[0].mxu0
  %v452 = vadd.f32 %v335, %v451
  %v453 = vpop.f32.mrb[0].mxu0
  %454 = vmatprep.mubr.f32.mxu0 0.0
  %455 = vmatmul.mubr.f32.gmra.mrb[0].mxu0 %v355
  %v456 = vpop.f32.mrb[0].mxu0
  %v457 = vadd.f32 %v335, %v456
  %v458 = vpop.f32.mrb[0].mxu0
  %459 = vmatprep.mubr.f32.mxu0 0.0
  %460 = vmatmul.mubr.f32.gmra.mrb[0].mxu0 %v358
  %v461 = vpop.f32.mrb[0].mxu0
  %v462 = vadd.f32 %v335, %v461
  %v463 = vpop.f32.mrb[0].mxu0
  %464 = vdwg.mxu0
  %465 = vmatprep.subr.bf16.mxu0 0
  %466 = vmatpush1.bf16.msra.mxu0 %v47
  %467 = vmatprep.subr.bf16.mxu0 0
  %468 = vmatpush1.bf16.msra.mxu0 %v48
  %469 = vmatprep.subr.bf16.mxu0 0
  %470 = vmatpush1.bf16.msra.mxu0 %v49
  %471 = vmatprep.subr.bf16.mxu0 0
  %472 = vmatpush1.bf16.msra.mxu0 %v50
  %473 = vmatprep.subr.bf16.mxu0 0
  %474 = vmatpush1.bf16.msra.mxu0 %v51
  %475 = vmatprep.subr.bf16.mxu0 0
  %476 = vmatpush1.bf16.msra.mxu0 %v52
  %477 = vmatprep.subr.bf16.mxu0 0
  %478 = vmatpush1.bf16.msra.mxu0 %v53
  %479 = vmatprep.subr.bf16.mxu0 0
  %480 = vmatpush1.bf16.msra.mxu0 %v54
  %481 = vmatprep.subr.bf16.mxu0 0
  %482 = vmatpush1.bf16.msra.mxu0 0
  %483 = vmatprep.subr.bf16.mxu0 0
  %484 = vmatpush1.bf16.msra.mxu0 0
  %485 = vmatprep.subr.bf16.mxu0 0
  %486 = vmatpush1.bf16.msra.mxu0 0
  %487 = vmatprep.subr.bf16.mxu0 0
  %488 = vmatpush1.bf16.msra.mxu0 0
  %489 = vmatprep.subr.bf16.mxu0 0
  %490 = vmatpush1.bf16.msra.mxu0 0
  %491 = vmatprep.subr.bf16.mxu0 0
  %492 = vmatpush1.bf16.msra.mxu0 0
  %493 = vmatprep.subr.bf16.mxu0 0
  %494 = vmatpush1.bf16.msra.mxu0 0
  %495 = vmatprep.subr.bf16.mxu0 0
  %496 = vmatpush1.bf16.msra.mxu0 0
  %497 = vmatprep.mubr.bf16.mxu0 0
  %498 = vmatmul.mubr.bf16.gmra.mrb[0].mxu0 0
  %v499 = vpop.f32.mrb[0].mxu0
  %v500 = vadd.f32 0.0, %v499
  %v501 = vpop.f32.mrb[0].mxu0
  %v502 = vpop.f32.mrb[0].mxu0
  %v503 = vpop.f32.mrb[0].mxu0
  %504 = vdwg.mxu0
  %v505 = vadd.f32 %v427, %v500
  %v506 = vxor.u32 %v505, 2147483648
  %v507 = vmul.f32 %v506, 1.442695
  %v508 = vpow.pop %v507
  %v509 = vadd.f32 %v508, 1.0
  %v510 = vrcp.pop %v509
  %v511 = vmul.f32 1.0, %v510
  %v512 = vtanh.pop %v505
  %513 = vrot.lane.b32.xlu0 %v511, 96
  %v514 = vpop.permute.xlu0 %513
  %v515 = vmul.f32 %v514, 0.0
  %516 = vrot.lane.b32.xlu0 %v512, 64
  %v517 = vpop.permute.xlu0 %516
  %v518 = vmul.f32 %v511, %v517
  %v519 = vadd.f32 %v515, %v518
  %520 = vrot.lane.b32.xlu0 %v511, 32
  %v521 = vpop.permute.xlu0 %520
  %v522 = vtanh.pop %v519
  %v523 = vmul.f32 %v521, %v522
  %v524 = vpack.c.bf16 %v523, %v523
  %525 = vmatprep.subr.bf16.mxu0 0
  %526 = vmatpush1.bf16.msra.mxu0 %v95
  %527 = vmatprep.subr.bf16.mxu0 0
  %528 = vmatpush1.bf16.msra.mxu0 %v96
  %529 = vmatprep.subr.bf16.mxu0 0
  %530 = vmatpush1.bf16.msra.mxu0 %v97
  %531 = vmatprep.subr.bf16.mxu0 0
  %532 = vmatpush1.bf16.msra.mxu0 %v98
  %533 = vmatprep.subr.bf16.mxu0 0
  %534 = vmatpush1.bf16.msra.mxu0 %v99
  %535 = vmatprep.subr.bf16.mxu0 0
  %536 = vmatpush1.bf16.msra.mxu0 %v100
  %537 = vmatprep.subr.bf16.mxu0 0
  %538 = vmatpush1.bf16.msra.mxu0 %v101
  %539 = vmatprep.subr.bf16.mxu0 0
  %540 = vmatpush1.bf16.msra.mxu0 %v102
  %541 = vmatprep.subr.bf16.mxu0 0
  %542 = vmatpush1.bf16.msra.mxu0 0
  %543 = vmatprep.subr.bf16.mxu0 0
  %544 = vmatpush1.bf16.msra.mxu0 0
  %545 = vmatprep.subr.bf16.mxu0 0
  %546 = vmatpush1.bf16.msra.mxu0 0
  %547 = vmatprep.subr.bf16.mxu0 0
  %548 = vmatpush1.bf16.msra.mxu0 0
  %549 = vmatprep.subr.bf16.mxu0 0
  %550 = vmatpush1.bf16.msra.mxu0 0
  %551 = vmatprep.subr.bf16.mxu0 0
  %552 = vmatpush1.bf16.msra.mxu0 0
  %553 = vmatprep.subr.bf16.mxu0 0
  %554 = vmatpush1.bf16.msra.mxu0 0
  %555 = vmatprep.subr.bf16.mxu0 0
  %556 = vmatpush1.bf16.msra.mxu0 0
  %557 = vmatprep.mubr.bf16.mxu0 0
  %558 = vmatmul.mubr.bf16.gmra.mrb[0].mxu0 0
  %v559 = vpop.f32.mrb[0].mxu0
  %v560 = vadd.f32 0.0, %v559
  %v561 = vpop.f32.mrb[0].mxu0
  %v562 = vpop.f32.mrb[0].mxu0
  %v563 = vpop.f32.mrb[0].mxu0
  %564 = vdwg.mxu0
  %565 = vmatprep.subr.bf16.mxu0 0
  %566 = vmatpush1.bf16.msra.mxu0 %v71
  %567 = vmatprep.subr.bf16.mxu0 0
  %568 = vmatpush1.bf16.msra.mxu0 %v72
  %569 = vmatprep.subr.bf16.mxu0 0
  %570 = vmatpush1.bf16.msra.mxu0 %v73
  %571 = vmatprep.subr.bf16.mxu0 0
  %572 = vmatpush1.bf16.msra.mxu0 %v74
  %573 = vmatprep.subr.bf16.mxu0 0
  %574 = vmatpush1.bf16.msra.mxu0 %v75
  %575 = vmatprep.subr.bf16.mxu0 0
  %576 = vmatpush1.bf16.msra.mxu0 %v76
  %577 = vmatprep.subr.bf16.mxu0 0
  %578 = vmatpush1.bf16.msra.mxu0 %v77
  %579 = vmatprep.subr.bf16.mxu0 0
  %580 = vmatpush1.bf16.msra.mxu0 %v78
  %581 = vmatprep.subr.bf16.mxu0 0
  %582 = vmatpush1.bf16.msra.mxu0 0
  %583 = vmatprep.subr.bf16.mxu0 0
  %584 = vmatpush1.bf16.msra.mxu0 0
  %585 = vmatprep.subr.bf16.mxu0 0
  %586 = vmatpush1.bf16.msra.mxu0 0
  %587 = vmatprep.subr.bf16.mxu0 0
  %588 = vmatpush1.bf16.msra.mxu0 0
  %589 = vmatprep.subr.bf16.mxu0 0
  %590 = vmatpush1.bf16.msra.mxu0 0
  %591 = vmatprep.subr.bf16.mxu0 0
  %592 = vmatpush1.bf16.msra.mxu0 0
  %593 = vmatprep.subr.bf16.mxu0 0
  %594 = vmatpush1.bf16.msra.mxu0 0
  %595 = vmatprep.subr.bf16.mxu0 0
  %596 = vmatpush1.bf16.msra.mxu0 0
  %597 = vmatprep.mubr.bf16.mxu0 0
  %598 = vmatmul.mubr.bf16.gmra.mrb[0].mxu0 %v524
  %v599 = vpop.f32.mrb[0].mxu0
  %v600 = vadd.f32 %v560, %v599
  %v601 = vpop.f32.mrb[0].mxu0
  %v602 = vpop.f32.mrb[0].mxu0
  %v603 = vpop.f32.mrb[0].mxu0
  %604 = vdwg.mxu0
  %v605 = vadd.f32 %v600, %v108
  %v606 = vxor.u32 %v605, 2147483648
  %v607 = vmul.f32 %v606, 1.442695
  %v608 = vpow.pop %v607
  %v609 = vadd.f32 %v608, 1.0
  %v610 = vrcp.pop %v609
  %v611 = vmul.f32 1.0, %v610
  %v612 = vtanh.pop %v605
  %613 = vrot.lane.b32.xlu0 %v611, 96
  %v614 = vpop.permute.xlu0 %613
  %v615 = vmul.f32 %v614, 0.0
  %616 = vrot.lane.b32.xlu0 %v612, 64
  %v617 = vpop.permute.xlu0 %616
  %v618 = vmul.f32 %v611, %v617
  %v619 = vadd.f32 %v615, %v618
  %620 = vrot.lane.b32.xlu0 %v611, 32
  %v621 = vpop.permute.xlu0 %620
  %v622 = vtanh.pop %v619
  %v623 = vmul.f32 %v621, %v622
  %vm624 = vcmp.eq.s32.totalorder %v26, 1
  %v625 = vsel %vm624, 1, 0
  %626 = vset.pattern.permute.xlu0 0
  %627 = vperm.xlu0 %626, %v625
  %v628 = vpop.permute.xlu0 %627
  %vm629 = vcmp.eq.s32.totalorder %v628, 1
  %v630 = vsel %vm629, %v623, 0.0
  %631 = vmatprep.subr.bf16.mxu0 0
  %632 = vmatpush1.bf16.msra.mxu0 %v47
  %633 = vmatprep.subr.bf16.mxu0 0
  %634 = vmatpush1.bf16.msra.mxu0 %v48
  %635 = vmatprep.subr.bf16.mxu0 0
  %636 = vmatpush1.bf16.msra.mxu0 %v49
  %637 = vmatprep.subr.bf16.mxu0 0
  %638 = vmatpush1.bf16.msra.mxu0 %v50
  %639 = vmatprep.subr.bf16.mxu0 0
  %640 = vmatpush1.bf16.msra.mxu0 %v51
  %641 = vmatprep.subr.bf16.mxu0 0
  %642 = vmatpush1.bf16.msra.mxu0 %v52
  %643 = vmatprep.subr.bf16.mxu0 0
  %644 = vmatpush1.bf16.msra.mxu0 %v53
  %645 = vmatprep.subr.bf16.mxu0 0
  %646 = vmatpush1.bf16.msra.mxu0 %v54
  %647 = vmatprep.subr.bf16.mxu0 0
  %648 = vmatpush1.bf16.msra.mxu0 0
  %649 = vmatprep.subr.bf16.mxu0 0
  %650 = vmatpush1.bf16.msra.mxu0 0
  %651 = vmatprep.subr.bf16.mxu0 0
  %652 = vmatpush1.bf16.msra.mxu0 0
  %653 = vmatprep.subr.bf16.mxu0 0
  %654 = vmatpush1.bf16.msra.mxu0 0
  %655 = vmatprep.subr.bf16.mxu0 0
  %656 = vmatpush1.bf16.msra.mxu0 0
  %657 = vmatprep.subr.bf16.mxu0 0
  %658 = vmatpush1.bf16.msra.mxu0 0
  %659 = vmatprep.subr.bf16.mxu0 0
  %660 = vmatpush1.bf16.msra.mxu0 0
  %661 = vmatprep.subr.bf16.mxu0 0
  %662 = vmatpush1.bf16.msra.mxu0 0
  %663 = vmatprep.mubr.bf16.mxu0 0
  %664 = vmatmul.mubr.bf16.gmra.mrb[0].mxu0 %v524
  %v665 = vpop.f32.mrb[0].mxu0
  %v666 = vadd.f32 0.0, %v665
  %v667 = vpop.f32.mrb[0].mxu0
  %v668 = vpop.f32.mrb[0].mxu0
  %v669 = vpop.f32.mrb[0].mxu0
  %670 = vdwg.mxu0
  %v671 = vadd.f32 %v432, %v666
  %v672 = vxor.u32 %v671, 2147483648
  %v673 = vmul.f32 %v672, 1.442695
  %v674 = vpow.pop %v673
  %v675 = vadd.f32 %v674, 1.0
  %v676 = vrcp.pop %v675
  %v677 = vmul.f32 1.0, %v676
  %v678 = vtanh.pop %v671
  %679 = vrot.lane.b32.xlu0 %v677, 96
  %v680 = vpop.permute.xlu0 %679
  %v681 = vmul.f32 %v680, %v519
  %682 = vrot.lane.b32.xlu0 %v678, 64
  %v683 = vpop.permute.xlu0 %682
  %v684 = vmul.f32 %v677, %v683
  %v685 = vadd.f32 %v681, %v684
  %686 = vrot.lane.b32.xlu0 %v677, 32
  %v687 = vpop.permute.xlu0 %686
  %v688 = vtanh.pop %v685
  %v689 = vmul.f32 %v687, %v688
  %v690 = vpack.c.bf16 %v689, %v689
  %v691 = vpack.c.bf16 %v623, %v623
  %692 = vmatprep.subr.bf16.mxu0 0
  %693 = vmatpush1.bf16.msra.mxu0 %v95
  %694 = vmatprep.subr.bf16.mxu0 0
  %695 = vmatpush1.bf16.msra.mxu0 %v96
  %696 = vmatprep.subr.bf16.mxu0 0
  %697 = vmatpush1.bf16.msra.mxu0 %v97
  %698 = vmatprep.subr.bf16.mxu0 0
  %699 = vmatpush1.bf16.msra.mxu0 %v98
  %700 = vmatprep.subr.bf16.mxu0 0
  %701 = vmatpush1.bf16.msra.mxu0 %v99
  %702 = vmatprep.subr.bf16.mxu0 0
  %703 = vmatpush1.bf16.msra.mxu0 %v100
  %704 = vmatprep.subr.bf16.mxu0 0
  %705 = vmatpush1.bf16.msra.mxu0 %v101
  %706 = vmatprep.subr.bf16.mxu0 0
  %707 = vmatpush1.bf16.msra.mxu0 %v102
  %708 = vmatprep.subr.bf16.mxu0 0
  %709 = vmatpush1.bf16.msra.mxu0 0
  %710 = vmatprep.subr.bf16.mxu0 0
  %711 = vmatpush1.bf16.msra.mxu0 0
  %712 = vmatprep.subr.bf16.mxu0 0
  %713 = vmatpush1.bf16.msra.mxu0 0
  %714 = vmatprep.subr.bf16.mxu0 0
  %715 = vmatpush1.bf16.msra.mxu0 0
  %716 = vmatprep.subr.bf16.mxu0 0
  %717 = vmatpush1.bf16.msra.mxu0 0
  %718 = vmatprep.subr.bf16.mxu0 0
  %719 = vmatpush1.bf16.msra.mxu0 0
  %720 = vmatprep.subr.bf16.mxu0 0
  %721 = vmatpush1.bf16.msra.mxu0 0
  %722 = vmatprep.subr.bf16.mxu0 0
  %723 = vmatpush1.bf16.msra.mxu0 0
  %724 = vmatprep.mubr.bf16.mxu0 0
  %725 = vmatmul.mubr.bf16.gmra.mrb[0].mxu0 %v691
  %v726 = vpop.f32.mrb[0].mxu0
  %v727 = vadd.f32 0.0, %v726
  %v728 = vpop.f32.mrb[0].mxu0
  %v729 = vpop.f32.mrb[0].mxu0
  %v730 = vpop.f32.mrb[0].mxu0
  %731 = vdwg.mxu0
  %732 = vmatprep.subr.bf16.mxu0 0
  %733 = vmatpush1.bf16.msra.mxu0 %v71
  %734 = vmatprep.subr.bf16.mxu0 0
  %735 = vmatpush1.bf16.msra.mxu0 %v72
  %736 = vmatprep.subr.bf16.mxu0 0
  %737 = vmatpush1.bf16.msra.mxu0 %v73
  %738 = vmatprep.subr.bf16.mxu0 0
  %739 = vmatpush1.bf16.msra.mxu0 %v74
  %740 = vmatprep.subr.bf16.mxu0 0
  %741 = vmatpush1.bf16.msra.mxu0 %v75
  %742 = vmatprep.subr.bf16.mxu0 0
  %743 = vmatpush1.bf16.msra.mxu0 %v76
  %744 = vmatprep.subr.bf16.mxu0 0
  %745 = vmatpush1.bf16.msra.mxu0 %v77
  %746 = vmatprep.subr.bf16.mxu0 0
  %747 = vmatpush1.bf16.msra.mxu0 %v78
  %748 = vmatprep.subr.bf16.mxu0 0
  %749 = vmatpush1.bf16.msra.mxu0 0
  %750 = vmatprep.subr.bf16.mxu0 0
  %751 = vmatpush1.bf16.msra.mxu0 0
  %752 = vmatprep.subr.bf16.mxu0 0
  %753 = vmatpush1.bf16.msra.mxu0 0
  %754 = vmatprep.subr.bf16.mxu0 0
  %755 = vmatpush1.bf16.msra.mxu0 0
  %756 = vmatprep.subr.bf16.mxu0 0
  %757 = vmatpush1.bf16.msra.mxu0 0
  %758 = vmatprep.subr.bf16.mxu0 0
  %759 = vmatpush1.bf16.msra.mxu0 0
  %760 = vmatprep.subr.bf16.mxu0 0
  %761 = vmatpush1.bf16.msra.mxu0 0
  %762 = vmatprep.subr.bf16.mxu0 0
  %763 = vmatpush1.bf16.msra.mxu0 0
  %764 = vmatprep.mubr.bf16.mxu0 0
  %765 = vmatmul.mubr.bf16.gmra.mrb[0].mxu0 %v690
  %v766 = vpop.f32.mrb[0].mxu0
  %v767 = vadd.f32 %v727, %v766
  %v768 = vpop.f32.mrb[0].mxu0
  %v769 = vpop.f32.mrb[0].mxu0
  %v770 = vpop.f32.mrb[0].mxu0
  %771 = vdwg.mxu0
  %v772 = vadd.f32 %v767, %v108
  %v773 = vxor.u32 %v772, 2147483648
  %v774 = vmul.f32 %v773, 1.442695
  %v775 = vpow.pop %v774
  %v776 = vadd.f32 %v775, 1.0
  %v777 = vrcp.pop %v776
  %v778 = vmul.f32 1.0, %v777
  %v779 = vtanh.pop %v772
  %780 = vrot.lane.b32.xlu0 %v778, 96
  %v781 = vpop.permute.xlu0 %780
  %v782 = vmul.f32 %v781, %v619
  %783 = vrot.lane.b32.xlu0 %v779, 64
  %v784 = vpop.permute.xlu0 %783
  %v785 = vmul.f32 %v778, %v784
  %v786 = vadd.f32 %v782, %v785
  %787 = vrot.lane.b32.xlu0 %v778, 32
  %v788 = vpop.permute.xlu0 %787
  %v789 = vtanh.pop %v786
  %v790 = vmul.f32 %v788, %v789
  %vm791 = vcmp.eq.s32.totalorder %v26, 2
  %v792 = vsel %vm791, 1, 0
  %793 = vset.pattern.permute.xlu0 0
  %794 = vperm.xlu0 %793, %v792
  %v795 = vpop.permute.xlu0 %794
  %vm796 = vcmp.eq.s32.totalorder %v795, 1
  %v797 = vsel %vm796, %v790, %v630
  %798 = vmatprep.subr.bf16.mxu0 0
  %799 = vmatpush1.bf16.msra.mxu0 %v47
  %800 = vmatprep.subr.bf16.mxu0 0
  %801 = vmatpush1.bf16.msra.mxu0 %v48
  %802 = vmatprep.subr.bf16.mxu0 0
  %803 = vmatpush1.bf16.msra.mxu0 %v49
  %804 = vmatprep.subr.bf16.mxu0 0
  %805 = vmatpush1.bf16.msra.mxu0 %v50
  %806 = vmatprep.subr.bf16.mxu0 0
  %807 = vmatpush1.bf16.msra.mxu0 %v51
  %808 = vmatprep.subr.bf16.mxu0 0
  %809 = vmatpush1.bf16.msra.mxu0 %v52
  %810 = vmatprep.subr.bf16.mxu0 0
  %811 = vmatpush1.bf16.msra.mxu0 %v53
  %812 = vmatprep.subr.bf16.mxu0 0
  %813 = vmatpush1.bf16.msra.mxu0 %v54
  %814 = vmatprep.subr.bf16.mxu0 0
  %815 = vmatpush1.bf16.msra.mxu0 0
  %816 = vmatprep.subr.bf16.mxu0 0
  %817 = vmatpush1.bf16.msra.mxu0 0
  %818 = vmatprep.subr.bf16.mxu0 0
  %819 = vmatpush1.bf16.msra.mxu0 0
  %820 = vmatprep.subr.bf16.mxu0 0
  %821 = vmatpush1.bf16.msra.mxu0 0
  %822 = vmatprep.subr.bf16.mxu0 0
  %823 = vmatpush1.bf16.msra.mxu0 0
  %824 = vmatprep.subr.bf16.mxu0 0
  %825 = vmatpush1.bf16.msra.mxu0 0
  %826 = vmatprep.subr.bf16.mxu0 0
  %827 = vmatpush1.bf16.msra.mxu0 0
  %828 = vmatprep.subr.bf16.mxu0 0
  %829 = vmatpush1.bf16.msra.mxu0 0
  %830 = vmatprep.mubr.bf16.mxu0 0
  %831 = vmatmul.mubr.bf16.gmra.mrb[0].mxu0 %v690
  %v832 = vpop.f32.mrb[0].mxu0
  %v833 = vadd.f32 0.0, %v832
  %v834 = vpop.f32.mrb[0].mxu0
  %v835 = vpop.f32.mrb[0].mxu0
  %v836 = vpop.f32.mrb[0].mxu0
  %837 = vdwg.mxu0
  %v838 = vadd.f32 %v437, %v833
  %v839 = vxor.u32 %v838, 2147483648
  %v840 = vmul.f32 %v839, 1.442695
  %v841 = vpow.pop %v840
  %v842 = vadd.f32 %v841, 1.0
  %v843 = vrcp.pop %v842
  %v844 = vmul.f32 1.0, %v843
  %v845 = vtanh.pop %v838
  %846 = vrot.lane.b32.xlu0 %v844, 96
  %v847 = vpop.permute.xlu0 %846
  %v848 = vmul.f32 %v847, %v685
  %849 = vrot.lane.b32.xlu0 %v845, 64
  %v850 = vpop.permute.xlu0 %849
  %v851 = vmul.f32 %v844, %v850
  %v852 = vadd.f32 %v848, %v851
  %853 = vrot.lane.b32.xlu0 %v844, 32
  %v854 = vpop.permute.xlu0 %853
  %v855 = vtanh.pop %v852
  %v856 = vmul.f32 %v854, %v855
  %v857 = vpack.c.bf16 %v856, %v856
  %v858 = vpack.c.bf16 %v790, %v790
  %859 = vmatprep.subr.bf16.mxu0 0
  %860 = vmatpush1.bf16.msra.mxu0 %v95
  %861 = vmatprep.subr.bf16.mxu0 0
  %862 = vmatpush1.bf16.msra.mxu0 %v96
  %863 = vmatprep.subr.bf16.mxu0 0
  %864 = vmatpush1.bf16.msra.mxu0 %v97
  %865 = vmatprep.subr.bf16.mxu0 0
  %866 = vmatpush1.bf16.msra.mxu0 %v98
  %867 = vmatprep.subr.bf16.mxu0 0
  %868 = vmatpush1.bf16.msra.mxu0 %v99
  %869 = vmatprep.subr.bf16.mxu0 0
  %870 = vmatpush1.bf16.msra.mxu0 %v100
  %871 = vmatprep.subr.bf16.mxu0 0
  %872 = vmatpush1.bf16.msra.mxu0 %v101
  %873 = vmatprep.subr.bf16.mxu0 0
  %874 = vmatpush1.bf16.msra.mxu0 %v102
  %875 = vmatprep.subr.bf16.mxu0 0
  %876 = vmatpush1.bf16.msra.mxu0 0
  %877 = vmatprep.subr.bf16.mxu0 0
  %878 = vmatpush1.bf16.msra.mxu0 0
  %879 = vmatprep.subr.bf16.mxu0 0
  %880 = vmatpush1.bf16.msra.mxu0 0
  %881 = vmatprep.subr.bf16.mxu0 0
  %882 = vmatpush1.bf16.msra.mxu0 0
  %883 = vmatprep.subr.bf16.mxu0 0
  %884 = vmatpush1.bf16.msra.mxu0 0
  %885 = vmatprep.subr.bf16.mxu0 0
  %886 = vmatpush1.bf16.msra.mxu0 0
  %887 = vmatprep.subr.bf16.mxu0 0
  %888 = vmatpush1.bf16.msra.mxu0 0
  %889 = vmatprep.subr.bf16.mxu0 0
  %890 = vmatpush1.bf16.msra.mxu0 0
  %891 = vmatprep.mubr.bf16.mxu0 0
  %892 = vmatmul.mubr.bf16.gmra.mrb[0].mxu0 %v858
  %v893 = vpop.f32.mrb[0].mxu0
  %v894 = vadd.f32 0.0, %v893
  %v895 = vpop.f32.mrb[0].mxu0
  %v896 = vpop.f32.mrb[0].mxu0
  %v897 = vpop.f32.mrb[0].mxu0
  %898 = vdwg.mxu0
  %899 = vmatprep.subr.bf16.mxu0 0
  %900 = vmatpush1.bf16.msra.mxu0 %v71
  %901 = vmatprep.subr.bf16.mxu0 0
  %902 = vmatpush1.bf16.msra.mxu0 %v72
  %903 = vmatprep.subr.bf16.mxu0 0
  %904 = vmatpush1.bf16.msra.mxu0 %v73
  %905 = vmatprep.subr.bf16.mxu0 0
  %906 = vmatpush1.bf16.msra.mxu0 %v74
  %907 = vmatprep.subr.bf16.mxu0 0
  %908 = vmatpush1.bf16.msra.mxu0 %v75
  %909 = vmatprep.subr.bf16.mxu0 0
  %910 = vmatpush1.bf16.msra.mxu0 %v76
  %911 = vmatprep.subr.bf16.mxu0 0
  %912 = vmatpush1.bf16.msra.mxu0 %v77
  %913 = vmatprep.subr.bf16.mxu0 0
  %914 = vmatpush1.bf16.msra.mxu0 %v78
  %915 = vmatprep.subr.bf16.mxu0 0
  %916 = vmatpush1.bf16.msra.mxu0 0
  %917 = vmatprep.subr.bf16.mxu0 0
  %918 = vmatpush1.bf16.msra.mxu0 0
  %919 = vmatprep.subr.bf16.mxu0 0
  %920 = vmatpush1.bf16.msra.mxu0 0
  %921 = vmatprep.subr.bf16.mxu0 0
  %922 = vmatpush1.bf16.msra.mxu0 0
  %923 = vmatprep.subr.bf16.mxu0 0
  %924 = vmatpush1.bf16.msra.mxu0 0
  %925 = vmatprep.subr.bf16.mxu0 0
  %926 = vmatpush1.bf16.msra.mxu0 0
  %927 = vmatprep.subr.bf16.mxu0 0
  %928 = vmatpush1.bf16.msra.mxu0 0
  %929 = vmatprep.subr.bf16.mxu0 0
  %930 = vmatpush1.bf16.msra.mxu0 0
  %931 = vmatprep.mubr.bf16.mxu0 0
  %932 = vmatmul.mubr.bf16.gmra.mrb[0].mxu0 %v857
  %v933 = vpop.f32.mrb[0].mxu0
  %v934 = vadd.f32 %v894, %v933
  %v935 = vpop.f32.mrb[0].mxu0
  %v936 = vpop.f32.mrb[0].mxu0
  %v937 = vpop.f32.mrb[0].mxu0
  %938 = vdwg.mxu0
  %v939 = vadd.f32 %v934, %v108
  %v940 = vxor.u32 %v939, 2147483648
  %v941 = vmul.f32 %v940, 1.442695
  %v942 = vpow.pop %v941
  %v943 = vadd.f32 %v942, 1.0
  %v944 = vrcp.pop %v943
  %v945 = vmul.f32 1.0, %v944
  %v946 = vtanh.pop %v939
  %947 = vrot.lane.b32.xlu0 %v945, 96
  %v948 = vpop.permute.xlu0 %947
  %v949 = vmul.f32 %v948, %v786
  %950 = vrot.lane.b32.xlu0 %v946, 64
  %v951 = vpop.permute.xlu0 %950
  %v952 = vmul.f32 %v945, %v951
  %v953 = vadd.f32 %v949, %v952
  %954 = vrot.lane.b32.xlu0 %v945, 32
  %v955 = vpop.permute.xlu0 %954
  %v956 = vtanh.pop %v953
  %v957 = vmul.f32 %v955, %v956
  %vm958 = vcmp.eq.s32.totalorder %v26, 3
  %v959 = vsel %vm958, 1, 0
  %960 = vset.pattern.permute.xlu0 0
  %961 = vperm.xlu0 %960, %v959
  %v962 = vpop.permute.xlu0 %961
  %vm963 = vcmp.eq.s32.totalorder %v962, 1
  %v964 = vsel %vm963, %v957, %v797
  %965 = vmatprep.subr.bf16.mxu0 0
  %966 = vmatpush1.bf16.msra.mxu0 %v47
  %967 = vmatprep.subr.bf16.mxu0 0
  %968 = vmatpush1.bf16.msra.mxu0 %v48
  %969 = vmatprep.subr.bf16.mxu0 0
  %970 = vmatpush1.bf16.msra.mxu0 %v49
  %971 = vmatprep.subr.bf16.mxu0 0
  %972 = vmatpush1.bf16.msra.mxu0 %v50
  %973 = vmatprep.subr.bf16.mxu0 0
  %974 = vmatpush1.bf16.msra.mxu0 %v51
  %975 = vmatprep.subr.bf16.mxu0 0
  %976 = vmatpush1.bf16.msra.mxu0 %v52
  %977 = vmatprep.subr.bf16.mxu0 0
  %978 = vmatpush1.bf16.msra.mxu0 %v53
  %979 = vmatprep.subr.bf16.mxu0 0
  %980 = vmatpush1.bf16.msra.mxu0 %v54
  %981 = vmatprep.subr.bf16.mxu0 0
  %982 = vmatpush1.bf16.msra.mxu0 0
  %983 = vmatprep.subr.bf16.mxu0 0
  %984 = vmatpush1.bf16.msra.mxu0 0
  %985 = vmatprep.subr.bf16.mxu0 0
  %986 = vmatpush1.bf16.msra.mxu0 0
  %987 = vmatprep.subr.bf16.mxu0 0
  %988 = vmatpush1.bf16.msra.mxu0 0
  %989 = vmatprep.subr.bf16.mxu0 0
  %990 = vmatpush1.bf16.msra.mxu0 0
  %991 = vmatprep.subr.bf16.mxu0 0
  %992 = vmatpush1.bf16.msra.mxu0 0
  %993 = vmatprep.subr.bf16.mxu0 0
  %994 = vmatpush1.bf16.msra.mxu0 0
  %995 = vmatprep.subr.bf16.mxu0 0
  %996 = vmatpush1.bf16.msra.mxu0 0
  %997 = vmatprep.mubr.bf16.mxu0 0
  %998 = vmatmul.mubr.bf16.gmra.mrb[0].mxu0 %v857
  %v999 = vpop.f32.mrb[0].mxu0
  %v1000 = vadd.f32 0.0, %v999
  %v1001 = vpop.f32.mrb[0].mxu0
  %v1002 = vpop.f32.mrb[0].mxu0
  %v1003 = vpop.f32.mrb[0].mxu0
  %1004 = vdwg.mxu0
  %v1005 = vadd.f32 %v442, %v1000
  %v1006 = vxor.u32 %v1005, 2147483648
  %v1007 = vmul.f32 %v1006, 1.442695
  %v1008 = vpow.pop %v1007
  %v1009 = vadd.f32 %v1008, 1.0
  %v1010 = vrcp.pop %v1009
  %v1011 = vmul.f32 1.0, %v1010
  %v1012 = vtanh.pop %v1005
  %1013 = vrot.lane.b32.xlu0 %v1011, 96
  %v1014 = vpop.permute.xlu0 %1013
  %v1015 = vmul.f32 %v1014, %v852
  %1016 = vrot.lane.b32.xlu0 %v1012, 64
  %v1017 = vpop.permute.xlu0 %1016
  %v1018 = vmul.f32 %v1011, %v1017
  %v1019 = vadd.f32 %v1015, %v1018
  %1020 = vrot.lane.b32.xlu0 %v1011, 32
  %v1021 = vpop.permute.xlu0 %1020
  %v1022 = vtanh.pop %v1019
  %v1023 = vmul.f32 %v1021, %v1022
  %v1024 = vpack.c.bf16 %v1023, %v1023
  %v1025 = vpack.c.bf16 %v957, %v957
  %1026 = vmatprep.subr.bf16.mxu0 0
  %1027 = vmatpush1.bf16.msra.mxu0 %v95
  %1028 = vmatprep.subr.bf16.mxu0 0
  %1029 = vmatpush1.bf16.msra.mxu0 %v96
  %1030 = vmatprep.subr.bf16.mxu0 0
  %1031 = vmatpush1.bf16.msra.mxu0 %v97
  %1032 = vmatprep.subr.bf16.mxu0 0
  %1033 = vmatpush1.bf16.msra.mxu0 %v98
  %1034 = vmatprep.subr.bf16.mxu0 0
  %1035 = vmatpush1.bf16.msra.mxu0 %v99
  %1036 = vmatprep.subr.bf16.mxu0 0
  %1037 = vmatpush1.bf16.msra.mxu0 %v100
  %1038 = vmatprep.subr.bf16.mxu0 0
  %1039 = vmatpush1.bf16.msra.mxu0 %v101
  %1040 = vmatprep.subr.bf16.mxu0 0
  %1041 = vmatpush1.bf16.msra.mxu0 %v102
  %1042 = vmatprep.subr.bf16.mxu0 0
  %1043 = vmatpush1.bf16.msra.mxu0 0
  %1044 = vmatprep.subr.bf16.mxu0 0
  %1045 = vmatpush1.bf16.msra.mxu0 0
  %1046 = vmatprep.subr.bf16.mxu0 0
  %1047 = vmatpush1.bf16.msra.mxu0 0
  %1048 = vmatprep.subr.bf16.mxu0 0
  %1049 = vmatpush1.bf16.msra.mxu0 0
  %1050 = vmatprep.subr.bf16.mxu0 0
  %1051 = vmatpush1.bf16.msra.mxu0 0
  %1052 = vmatprep.subr.bf16.mxu0 0
  %1053 = vmatpush1.bf16.msra.mxu0 0
  %1054 = vmatprep.subr.bf16.mxu0 0
  %1055 = vmatpush1.bf16.msra.mxu0 0
  %1056 = vmatprep.subr.bf16.mxu0 0
  %1057 = vmatpush1.bf16.msra.mxu0 0
  %1058 = vmatprep.mubr.bf16.mxu0 0
  %1059 = vmatmul.mubr.bf16.gmra.mrb[0].mxu0 %v1025
  %v1060 = vpop.f32.mrb[0].mxu0
  %v1061 = vadd.f32 0.0, %v1060
  %v1062 = vpop.f32.mrb[0].mxu0
  %v1063 = vpop.f32.mrb[0].mxu0
  %v1064 = vpop.f32.mrb[0].mxu0
  %1065 = vdwg.mxu0
  %1066 = vmatprep.subr.bf16.mxu0 0
  %1067 = vmatpush1.bf16.msra.mxu0 %v71
  %1068 = vmatprep.subr.bf16.mxu0 0
  %1069 = vmatpush1.bf16.msra.mxu0 %v72
  %1070 = vmatprep.subr.bf16.mxu0 0
  %1071 = vmatpush1.bf16.msra.mxu0 %v73
  %1072 = vmatprep.subr.bf16.mxu0 0
  %1073 = vmatpush1.bf16.msra.mxu0 %v74
  %1074 = vmatprep.subr.bf16.mxu0 0
  %1075 = vmatpush1.bf16.msra.mxu0 %v75
  %1076 = vmatprep.subr.bf16.mxu0 0
  %1077 = vmatpush1.bf16.msra.mxu0 %v76
  %1078 = vmatprep.subr.bf16.mxu0 0
  %1079 = vmatpush1.bf16.msra.mxu0 %v77
  %1080 = vmatprep.subr.bf16.mxu0 0
  %1081 = vmatpush1.bf16.msra.mxu0 %v78
  %1082 = vmatprep.subr.bf16.mxu0 0
  %1083 = vmatpush1.bf16.msra.mxu0 0
  %1084 = vmatprep.subr.bf16.mxu0 0
  %1085 = vmatpush1.bf16.msra.mxu0 0
  %1086 = vmatprep.subr.bf16.mxu0 0
  %1087 = vmatpush1.bf16.msra.mxu0 0
  %1088 = vmatprep.subr.bf16.mxu0 0
  %1089 = vmatpush1.bf16.msra.mxu0 0
  %1090 = vmatprep.subr.bf16.mxu0 0
  %1091 = vmatpush1.bf16.msra.mxu0 0
  %1092 = vmatprep.subr.bf16.mxu0 0
  %1093 = vmatpush1.bf16.msra.mxu0 0
  %1094 = vmatprep.subr.bf16.mxu0 0
  %1095 = vmatpush1.bf16.msra.mxu0 0
  %1096 = vmatprep.subr.bf16.mxu0 0
  %1097 = vmatpush1.bf16.msra.mxu0 0
  %1098 = vmatprep.mubr.bf16.mxu0 0
  %1099 = vmatmul.mubr.bf16.gmra.mrb[0].mxu0 %v1024
  %v1100 = vpop.f32.mrb[0].mxu0
  %v1101 = vadd.f32 %v1061, %v1100
  %v1102 = vpop.f32.mrb[0].mxu0
  %v1103 = vpop.f32.mrb[0].mxu0
  %v1104 = vpop.f32.mrb[0].mxu0
  %1105 = vdwg.mxu0
  %v1106 = vadd.f32 %v1101, %v108
  %v1107 = vxor.u32 %v1106, 2147483648
  %v1108 = vmul.f32 %v1107, 1.442695
  %v1109 = vpow.pop %v1108
  %v1110 = vadd.f32 %v1109, 1.0
  %v1111 = vrcp.pop %v1110
  %v1112 = vmul.f32 1.0, %v1111
  %v1113 = vtanh.pop %v1106
  %1114 = vrot.lane.b32.xlu0 %v1112, 96
  %v1115 = vpop.permute.xlu0 %1114
  %v1116 = vmul.f32 %v1115, %v953
  %1117 = vrot.lane.b32.xlu0 %v1113, 64
  %v1118 = vpop.permute.xlu0 %1117
  %v1119 = vmul.f32 %v1112, %v1118
  %v1120 = vadd.f32 %v1116, %v1119
  %1121 = vrot.lane.b32.xlu0 %v1112, 32
  %v1122 = vpop.permute.xlu0 %1121
  %v1123 = vtanh.pop %v1120
  %v1124 = vmul.f32 %v1122, %v1123
  %vm1125 = vcmp.eq.s32.totalorder %v26, 4
  %v1126 = vsel %vm1125, 1, 0
  %1127 = vset.pattern.permute.xlu0 0
  %1128 = vperm.xlu0 %1127, %v1126
  %v1129 = vpop.permute.xlu0 %1128
  %vm1130 = vcmp.eq.s32.totalorder %v1129, 1
  %v1131 = vsel %vm1130, %v1124, %v964
  %1132 = vmatprep.subr.bf16.mxu0 0
  %1133 = vmatpush1.bf16.msra.mxu0 %v47
  %1134 = vmatprep.subr.bf16.mxu0 0
  %1135 = vmatpush1.bf16.msra.mxu0 %v48
  %1136 = vmatprep.subr.bf16.mxu0 0
  %1137 = vmatpush1.bf16.msra.mxu0 %v49
  %1138 = vmatprep.subr.bf16.mxu0 0
  %1139 = vmatpush1.bf16.msra.mxu0 %v50
  %1140 = vmatprep.subr.bf16.mxu0 0
  %1141 = vmatpush1.bf16.msra.mxu0 %v51
  %1142 = vmatprep.subr.bf16.mxu0 0
  %1143 = vmatpush1.bf16.msra.mxu0 %v52
  %1144 = vmatprep.subr.bf16.mxu0 0
  %1145 = vmatpush1.bf16.msra.mxu0 %v53
  %1146 = vmatprep.subr.bf16.mxu0 0
  %1147 = vmatpush1.bf16.msra.mxu0 %v54
  %1148 = vmatprep.subr.bf16.mxu0 0
  %1149 = vmatpush1.bf16.msra.mxu0 0
  %1150 = vmatprep.subr.bf16.mxu0 0
  %1151 = vmatpush1.bf16.msra.mxu0 0
  %1152 = vmatprep.subr.bf16.mxu0 0
  %1153 = vmatpush1.bf16.msra.mxu0 0
  %1154 = vmatprep.subr.bf16.mxu0 0
  %1155 = vmatpush1.bf16.msra.mxu0 0
  %1156 = vmatprep.subr.bf16.mxu0 0
  %1157 = vmatpush1.bf16.msra.mxu0 0
  %1158 = vmatprep.subr.bf16.mxu0 0
  %1159 = vmatpush1.bf16.msra.mxu0 0
  %1160 = vmatprep.subr.bf16.mxu0 0
  %1161 = vmatpush1.bf16.msra.mxu0 0
  %1162 = vmatprep.subr.bf16.mxu0 0
  %1163 = vmatpush1.bf16.msra.mxu0 0
  %1164 = vmatprep.mubr.bf16.mxu0 0
  %1165 = vmatmul.mubr.bf16.gmra.mrb[0].mxu0 %v1024
  %v1166 = vpop.f32.mrb[0].mxu0
  %v1167 = vadd.f32 0.0, %v1166
  %v1168 = vpop.f32.mrb[0].mxu0
  %v1169 = vpop.f32.mrb[0].mxu0
  %v1170 = vpop.f32.mrb[0].mxu0
  %1171 = vdwg.mxu0
  %v1172 = vadd.f32 %v447, %v1167
  %v1173 = vxor.u32 %v1172, 2147483648
  %v1174 = vmul.f32 %v1173, 1.442695
  %v1175 = vpow.pop %v1174
  %v1176 = vadd.f32 %v1175, 1.0
  %v1177 = vrcp.pop %v1176
  %v1178 = vmul.f32 1.0, %v1177
  %v1179 = vtanh.pop %v1172
  %1180 = vrot.lane.b32.xlu0 %v1178, 96
  %v1181 = vpop.permute.xlu0 %1180
  %v1182 = vmul.f32 %v1181, %v1019
  %1183 = vrot.lane.b32.xlu0 %v1179, 64
  %v1184 = vpop.permute.xlu0 %1183
  %v1185 = vmul.f32 %v1178, %v1184
  %v1186 = vadd.f32 %v1182, %v1185
  %1187 = vrot.lane.b32.xlu0 %v1178, 32
  %v1188 = vpop.permute.xlu0 %1187
  %v1189 = vtanh.pop %v1186
  %v1190 = vmul.f32 %v1188, %v1189
  %v1191 = vpack.c.bf16 %v1190, %v1190
  %v1192 = vpack.c.bf16 %v1124, %v1124
  %1193 = vmatprep.subr.bf16.mxu0 0
  %1194 = vmatpush1.bf16.msra.mxu0 %v95
  %1195 = vmatprep.subr.bf16.mxu0 0
  %1196 = vmatpush1.bf16.msra.mxu0 %v96
  %1197 = vmatprep.subr.bf16.mxu0 0
  %1198 = vmatpush1.bf16.msra.mxu0 %v97
  %1199 = vmatprep.subr.bf16.mxu0 0
  %1200 = vmatpush1.bf16.msra.mxu0 %v98
  %1201 = vmatprep.subr.bf16.mxu0 0
  %1202 = vmatpush1.bf16.msra.mxu0 %v99
  %1203 = vmatprep.subr.bf16.mxu0 0
  %1204 = vmatpush1.bf16.msra.mxu0 %v100
  %1205 = vmatprep.subr.bf16.mxu0 0
  %1206 = vmatpush1.bf16.msra.mxu0 %v101
  %1207 = vmatprep.subr.bf16.mxu0 0
  %1208 = vmatpush1.bf16.msra.mxu0 %v102
  %1209 = vmatprep.subr.bf16.mxu0 0
  %1210 = vmatpush1.bf16.msra.mxu0 0
  %1211 = vmatprep.subr.bf16.mxu0 0
  %1212 = vmatpush1.bf16.msra.mxu0 0
  %1213 = vmatprep.subr.bf16.mxu0 0
  %1214 = vmatpush1.bf16.msra.mxu0 0
  %1215 = vmatprep.subr.bf16.mxu0 0
  %1216 = vmatpush1.bf16.msra.mxu0 0
  %1217 = vmatprep.subr.bf16.mxu0 0
  %1218 = vmatpush1.bf16.msra.mxu0 0
  %1219 = vmatprep.subr.bf16.mxu0 0
  %1220 = vmatpush1.bf16.msra.mxu0 0
  %1221 = vmatprep.subr.bf16.mxu0 0
  %1222 = vmatpush1.bf16.msra.mxu0 0
  %1223 = vmatprep.subr.bf16.mxu0 0
  %1224 = vmatpush1.bf16.msra.mxu0 0
  %1225 = vmatprep.mubr.bf16.mxu0 0
  %1226 = vmatmul.mubr.bf16.gmra.mrb[0].mxu0 %v1192
  %v1227 = vpop.f32.mrb[0].mxu0
  %v1228 = vadd.f32 0.0, %v1227
  %v1229 = vpop.f32.mrb[0].mxu0
  %v1230 = vpop.f32.mrb[0].mxu0
  %v1231 = vpop.f32.mrb[0].mxu0
  %1232 = vdwg.mxu0
  %1233 = vmatprep.subr.bf16.mxu0 0
  %1234 = vmatpush1.bf16.msra.mxu0 %v71
  %1235 = vmatprep.subr.bf16.mxu0 0
  %1236 = vmatpush1.bf16.msra.mxu0 %v72
  %1237 = vmatprep.subr.bf16.mxu0 0
  %1238 = vmatpush1.bf16.msra.mxu0 %v73
  %1239 = vmatprep.subr.bf16.mxu0 0
  %1240 = vmatpush1.bf16.msra.mxu0 %v74
  %1241 = vmatprep.subr.bf16.mxu0 0
  %1242 = vmatpush1.bf16.msra.mxu0 %v75
  %1243 = vmatprep.subr.bf16.mxu0 0
  %1244 = vmatpush1.bf16.msra.mxu0 %v76
  %1245 = vmatprep.subr.bf16.mxu0 0
  %1246 = vmatpush1.bf16.msra.mxu0 %v77
  %1247 = vmatprep.subr.bf16.mxu0 0
  %1248 = vmatpush1.bf16.msra.mxu0 %v78
  %1249 = vmatprep.subr.bf16.mxu0 0
  %1250 = vmatpush1.bf16.msra.mxu0 0
  %1251 = vmatprep.subr.bf16.mxu0 0
  %1252 = vmatpush1.bf16.msra.mxu0 0
  %1253 = vmatprep.subr.bf16.mxu0 0
  %1254 = vmatpush1.bf16.msra.mxu0 0
  %1255 = vmatprep.subr.bf16.mxu0 0
  %1256 = vmatpush1.bf16.msra.mxu0 0
  %1257 = vmatprep.subr.bf16.mxu0 0
  %1258 = vmatpush1.bf16.msra.mxu0 0
  %1259 = vmatprep.subr.bf16.mxu0 0
  %1260 = vmatpush1.bf16.msra.mxu0 0
  %1261 = vmatprep.subr.bf16.mxu0 0
  %1262 = vmatpush1.bf16.msra.mxu0 0
  %1263 = vmatprep.subr.bf16.mxu0 0
  %1264 = vmatpush1.bf16.msra.mxu0 0
  %1265 = vmatprep.mubr.bf16.mxu0 0
  %1266 = vmatmul.mubr.bf16.gmra.mrb[0].mxu0 %v1191
  %v1267 = vpop.f32.mrb[0].mxu0
  %v1268 = vadd.f32 %v1228, %v1267
  %v1269 = vpop.f32.mrb[0].mxu0
  %v1270 = vpop.f32.mrb[0].mxu0
  %v1271 = vpop.f32.mrb[0].mxu0
  %1272 = vdwg.mxu0
  %v1273 = vadd.f32 %v1268, %v108
  %v1274 = vxor.u32 %v1273, 2147483648
  %v1275 = vmul.f32 %v1274, 1.442695
  %v1276 = vpow.pop %v1275
  %v1277 = vadd.f32 %v1276, 1.0
  %v1278 = vrcp.pop %v1277
  %v1279 = vmul.f32 1.0, %v1278
  %v1280 = vtanh.pop %v1273
  %1281 = vrot.lane.b32.xlu0 %v1279, 96
  %v1282 = vpop.permute.xlu0 %1281
  %v1283 = vmul.f32 %v1282, %v1120
  %1284 = vrot.lane.b32.xlu0 %v1280, 64
  %v1285 = vpop.permute.xlu0 %1284
  %v1286 = vmul.f32 %v1279, %v1285
  %v1287 = vadd.f32 %v1283, %v1286
  %1288 = vrot.lane.b32.xlu0 %v1279, 32
  %v1289 = vpop.permute.xlu0 %1288
  %v1290 = vtanh.pop %v1287
  %v1291 = vmul.f32 %v1289, %v1290
  %vm1292 = vcmp.eq.s32.totalorder %v26, 5
  %v1293 = vsel %vm1292, 1, 0
  %1294 = vset.pattern.permute.xlu0 0
  %1295 = vperm.xlu0 %1294, %v1293
  %v1296 = vpop.permute.xlu0 %1295
  %vm1297 = vcmp.eq.s32.totalorder %v1296, 1
  %v1298 = vsel %vm1297, %v1291, %v1131
  %1299 = vmatprep.subr.bf16.mxu0 0
  %1300 = vmatpush1.bf16.msra.mxu0 %v47
  %1301 = vmatprep.subr.bf16.mxu0 0
  %1302 = vmatpush1.bf16.msra.mxu0 %v48
  %1303 = vmatprep.subr.bf16.mxu0 0
  %1304 = vmatpush1.bf16.msra.mxu0 %v49
  %1305 = vmatprep.subr.bf16.mxu0 0
  %1306 = vmatpush1.bf16.msra.mxu0 %v50
  %1307 = vmatprep.subr.bf16.mxu0 0
  %1308 = vmatpush1.bf16.msra.mxu0 %v51
  %1309 = vmatprep.subr.bf16.mxu0 0
  %1310 = vmatpush1.bf16.msra.mxu0 %v52
  %1311 = vmatprep.subr.bf16.mxu0 0
  %1312 = vmatpush1.bf16.msra.mxu0 %v53
  %1313 = vmatprep.subr.bf16.mxu0 0
  %1314 = vmatpush1.bf16.msra.mxu0 %v54
  %1315 = vmatprep.subr.bf16.mxu0 0
  %1316 = vmatpush1.bf16.msra.mxu0 0
  %1317 = vmatprep.subr.bf16.mxu0 0
  %1318 = vmatpush1.bf16.msra.mxu0 0
  %1319 = vmatprep.subr.bf16.mxu0 0
  %1320 = vmatpush1.bf16.msra.mxu0 0
  %1321 = vmatprep.subr.bf16.mxu0 0
  %1322 = vmatpush1.bf16.msra.mxu0 0
  %1323 = vmatprep.subr.bf16.mxu0 0
  %1324 = vmatpush1.bf16.msra.mxu0 0
  %1325 = vmatprep.subr.bf16.mxu0 0
  %1326 = vmatpush1.bf16.msra.mxu0 0
  %1327 = vmatprep.subr.bf16.mxu0 0
  %1328 = vmatpush1.bf16.msra.mxu0 0
  %1329 = vmatprep.subr.bf16.mxu0 0
  %1330 = vmatpush1.bf16.msra.mxu0 0
  %1331 = vmatprep.mubr.bf16.mxu0 0
  %1332 = vmatmul.mubr.bf16.gmra.mrb[0].mxu0 %v1191
  %v1333 = vpop.f32.mrb[0].mxu0
  %v1334 = vadd.f32 0.0, %v1333
  %v1335 = vpop.f32.mrb[0].mxu0
  %v1336 = vpop.f32.mrb[0].mxu0
  %v1337 = vpop.f32.mrb[0].mxu0
  %1338 = vdwg.mxu0
  %v1339 = vadd.f32 %v452, %v1334
  %v1340 = vxor.u32 %v1339, 2147483648
  %v1341 = vmul.f32 %v1340, 1.442695
  %v1342 = vpow.pop %v1341
  %v1343 = vadd.f32 %v1342, 1.0
  %v1344 = vrcp.pop %v1343
  %v1345 = vmul.f32 1.0, %v1344
  %v1346 = vtanh.pop %v1339
  %1347 = vrot.lane.b32.xlu0 %v1345, 96
  %v1348 = vpop.permute.xlu0 %1347
  %v1349 = vmul.f32 %v1348, %v1186
  %1350 = vrot.lane.b32.xlu0 %v1346, 64
  %v1351 = vpop.permute.xlu0 %1350
  %v1352 = vmul.f32 %v1345, %v1351
  %v1353 = vadd.f32 %v1349, %v1352
  %1354 = vrot.lane.b32.xlu0 %v1345, 32
  %v1355 = vpop.permute.xlu0 %1354
  %v1356 = vtanh.pop %v1353
  %v1357 = vmul.f32 %v1355, %v1356
  %v1358 = vpack.c.bf16 %v1357, %v1357
  %v1359 = vpack.c.bf16 %v1291, %v1291
  %1360 = vmatprep.subr.bf16.mxu0 0
  %1361 = vmatpush1.bf16.msra.mxu0 %v95
  %1362 = vmatprep.subr.bf16.mxu0 0
  %1363 = vmatpush1.bf16.msra.mxu0 %v96
  %1364 = vmatprep.subr.bf16.mxu0 0
  %1365 = vmatpush1.bf16.msra.mxu0 %v97
  %1366 = vmatprep.subr.bf16.mxu0 0
  %1367 = vmatpush1.bf16.msra.mxu0 %v98
  %1368 = vmatprep.subr.bf16.mxu0 0
  %1369 = vmatpush1.bf16.msra.mxu0 %v99
  %1370 = vmatprep.subr.bf16.mxu0 0
  %1371 = vmatpush1.bf16.msra.mxu0 %v100
  %1372 = vmatprep.subr.bf16.mxu0 0
  %1373 = vmatpush1.bf16.msra.mxu0 %v101
  %1374 = vmatprep.subr.bf16.mxu0 0
  %1375 = vmatpush1.bf16.msra.mxu0 %v102
  %1376 = vmatprep.subr.bf16.mxu0 0
  %1377 = vmatpush1.bf16.msra.mxu0 0
  %1378 = vmatprep.subr.bf16.mxu0 0
  %1379 = vmatpush1.bf16.msra.mxu0 0
  %1380 = vmatprep.subr.bf16.mxu0 0
  %1381 = vmatpush1.bf16.msra.mxu0 0
  %1382 = vmatprep.subr.bf16.mxu0 0
  %1383 = vmatpush1.bf16.msra.mxu0 0
  %1384 = vmatprep.subr.bf16.mxu0 0
  %1385 = vmatpush1.bf16.msra.mxu0 0
  %1386 = vmatprep.subr.bf16.mxu0 0
  %1387 = vmatpush1.bf16.msra.mxu0 0
  %1388 = vmatprep.subr.bf16.mxu0 0
  %1389 = vmatpush1.bf16.msra.mxu0 0
  %1390 = vmatprep.subr.bf16.mxu0 0
  %1391 = vmatpush1.bf16.msra.mxu0 0
  %1392 = vmatprep.mubr.bf16.mxu0 0
  %1393 = vmatmul.mubr.bf16.gmra.mrb[0].mxu0 %v1359
  %v1394 = vpop.f32.mrb[0].mxu0
  %v1395 = vadd.f32 0.0, %v1394
  %v1396 = vpop.f32.mrb[0].mxu0
  %v1397 = vpop.f32.mrb[0].mxu0
  %v1398 = vpop.f32.mrb[0].mxu0
  %1399 = vdwg.mxu0
  %1400 = vmatprep.subr.bf16.mxu0 0
  %1401 = vmatpush1.bf16.msra.mxu0 %v71
  %1402 = vmatprep.subr.bf16.mxu0 0
  %1403 = vmatpush1.bf16.msra.mxu0 %v72
  %1404 = vmatprep.subr.bf16.mxu0 0
  %1405 = vmatpush1.bf16.msra.mxu0 %v73
  %1406 = vmatprep.subr.bf16.mxu0 0
  %1407 = vmatpush1.bf16.msra.mxu0 %v74
  %1408 = vmatprep.subr.bf16.mxu0 0
  %1409 = vmatpush1.bf16.msra.mxu0 %v75
  %1410 = vmatprep.subr.bf16.mxu0 0
  %1411 = vmatpush1.bf16.msra.mxu0 %v76
  %1412 = vmatprep.subr.bf16.mxu0 0
  %1413 = vmatpush1.bf16.msra.mxu0 %v77
  %1414 = vmatprep.subr.bf16.mxu0 0
  %1415 = vmatpush1.bf16.msra.mxu0 %v78
  %1416 = vmatprep.subr.bf16.mxu0 0
  %1417 = vmatpush1.bf16.msra.mxu0 0
  %1418 = vmatprep.subr.bf16.mxu0 0
  %1419 = vmatpush1.bf16.msra.mxu0 0
  %1420 = vmatprep.subr.bf16.mxu0 0
  %1421 = vmatpush1.bf16.msra.mxu0 0
  %1422 = vmatprep.subr.bf16.mxu0 0
  %1423 = vmatpush1.bf16.msra.mxu0 0
  %1424 = vmatprep.subr.bf16.mxu0 0
  %1425 = vmatpush1.bf16.msra.mxu0 0
  %1426 = vmatprep.subr.bf16.mxu0 0
  %1427 = vmatpush1.bf16.msra.mxu0 0
  %1428 = vmatprep.subr.bf16.mxu0 0
  %1429 = vmatpush1.bf16.msra.mxu0 0
  %1430 = vmatprep.subr.bf16.mxu0 0
  %1431 = vmatpush1.bf16.msra.mxu0 0
  %1432 = vmatprep.mubr.bf16.mxu0 0
  %1433 = vmatmul.mubr.bf16.gmra.mrb[0].mxu0 %v1358
  %v1434 = vpop.f32.mrb[0].mxu0
  %v1435 = vadd.f32 %v1395, %v1434
  %v1436 = vpop.f32.mrb[0].mxu0
  %v1437 = vpop.f32.mrb[0].mxu0
  %v1438 = vpop.f32.mrb[0].mxu0
  %1439 = vdwg.mxu0
  %v1440 = vadd.f32 %v1435, %v108
  %v1441 = vxor.u32 %v1440, 2147483648
  %v1442 = vmul.f32 %v1441, 1.442695
  %v1443 = vpow.pop %v1442
  %v1444 = vadd.f32 %v1443, 1.0
  %v1445 = vrcp.pop %v1444
  %v1446 = vmul.f32 1.0, %v1445
  %v1447 = vtanh.pop %v1440
  %1448 = vrot.lane.b32.xlu0 %v1446, 96
  %v1449 = vpop.permute.xlu0 %1448
  %v1450 = vmul.f32 %v1449, %v1287
  %1451 = vrot.lane.b32.xlu0 %v1447, 64
  %v1452 = vpop.permute.xlu0 %1451
  %v1453 = vmul.f32 %v1446, %v1452
  %v1454 = vadd.f32 %v1450, %v1453
  %1455 = vrot.lane.b32.xlu0 %v1446, 32
  %v1456 = vpop.permute.xlu0 %1455
  %v1457 = vtanh.pop %v1454
  %v1458 = vmul.f32 %v1456, %v1457
  %vm1459 = vcmp.eq.s32.totalorder %v26, 6
  %v1460 = vsel %vm1459, 1, 0
  %1461 = vset.pattern.permute.xlu0 0
  %1462 = vperm.xlu0 %1461, %v1460
  %v1463 = vpop.permute.xlu0 %1462
  %vm1464 = vcmp.eq.s32.totalorder %v1463, 1
  %v1465 = vsel %vm1464, %v1458, %v1298
  %1466 = vmatprep.subr.bf16.mxu0 0
  %1467 = vmatpush1.bf16.msra.mxu0 %v47
  %1468 = vmatprep.subr.bf16.mxu0 0
  %1469 = vmatpush1.bf16.msra.mxu0 %v48
  %1470 = vmatprep.subr.bf16.mxu0 0
  %1471 = vmatpush1.bf16.msra.mxu0 %v49
  %1472 = vmatprep.subr.bf16.mxu0 0
  %1473 = vmatpush1.bf16.msra.mxu0 %v50
  %1474 = vmatprep.subr.bf16.mxu0 0
  %1475 = vmatpush1.bf16.msra.mxu0 %v51
  %1476 = vmatprep.subr.bf16.mxu0 0
  %1477 = vmatpush1.bf16.msra.mxu0 %v52
  %1478 = vmatprep.subr.bf16.mxu0 0
  %1479 = vmatpush1.bf16.msra.mxu0 %v53
  %1480 = vmatprep.subr.bf16.mxu0 0
  %1481 = vmatpush1.bf16.msra.mxu0 %v54
  %1482 = vmatprep.subr.bf16.mxu0 0
  %1483 = vmatpush1.bf16.msra.mxu0 0
  %1484 = vmatprep.subr.bf16.mxu0 0
  %1485 = vmatpush1.bf16.msra.mxu0 0
  %1486 = vmatprep.subr.bf16.mxu0 0
  %1487 = vmatpush1.bf16.msra.mxu0 0
  %1488 = vmatprep.subr.bf16.mxu0 0
  %1489 = vmatpush1.bf16.msra.mxu0 0
  %1490 = vmatprep.subr.bf16.mxu0 0
  %1491 = vmatpush1.bf16.msra.mxu0 0
  %1492 = vmatprep.subr.bf16.mxu0 0
  %1493 = vmatpush1.bf16.msra.mxu0 0
  %1494 = vmatprep.subr.bf16.mxu0 0
  %1495 = vmatpush1.bf16.msra.mxu0 0
  %1496 = vmatprep.subr.bf16.mxu0 0
  %1497 = vmatpush1.bf16.msra.mxu0 0
  %1498 = vmatprep.mubr.bf16.mxu0 0
  %1499 = vmatmul.mubr.bf16.gmra.mrb[0].mxu0 %v1358
  %v1500 = vpop.f32.mrb[0].mxu0
  %v1501 = vadd.f32 0.0, %v1500
  %v1502 = vpop.f32.mrb[0].mxu0
  %v1503 = vpop.f32.mrb[0].mxu0
  %v1504 = vpop.f32.mrb[0].mxu0
  %1505 = vdwg.mxu0
  %v1506 = vadd.f32 %v457, %v1501
  %v1507 = vxor.u32 %v1506, 2147483648
  %v1508 = vmul.f32 %v1507, 1.442695
  %v1509 = vpow.pop %v1508
  %v1510 = vadd.f32 %v1509, 1.0
  %v1511 = vrcp.pop %v1510
  %v1512 = vmul.f32 1.0, %v1511
  %v1513 = vtanh.pop %v1506
  %1514 = vrot.lane.b32.xlu0 %v1512, 96
  %v1515 = vpop.permute.xlu0 %1514
  %v1516 = vmul.f32 %v1515, %v1353
  %1517 = vrot.lane.b32.xlu0 %v1513, 64
  %v1518 = vpop.permute.xlu0 %1517
  %v1519 = vmul.f32 %v1512, %v1518
  %v1520 = vadd.f32 %v1516, %v1519
  %1521 = vrot.lane.b32.xlu0 %v1512, 32
  %v1522 = vpop.permute.xlu0 %1521
  %v1523 = vtanh.pop %v1520
  %v1524 = vmul.f32 %v1522, %v1523
  %v1525 = vpack.c.bf16 %v1524, %v1524
  %v1526 = vpack.c.bf16 %v1458, %v1458
  %1527 = vmatprep.subr.bf16.mxu0 0
  %1528 = vmatpush1.bf16.msra.mxu0 %v95
  %1529 = vmatprep.subr.bf16.mxu0 0
  %1530 = vmatpush1.bf16.msra.mxu0 %v96
  %1531 = vmatprep.subr.bf16.mxu0 0
  %1532 = vmatpush1.bf16.msra.mxu0 %v97
  %1533 = vmatprep.subr.bf16.mxu0 0
  %1534 = vmatpush1.bf16.msra.mxu0 %v98
  %1535 = vmatprep.subr.bf16.mxu0 0
  %1536 = vmatpush1.bf16.msra.mxu0 %v99
  %1537 = vmatprep.subr.bf16.mxu0 0
  %1538 = vmatpush1.bf16.msra.mxu0 %v100
  %1539 = vmatprep.subr.bf16.mxu0 0
  %1540 = vmatpush1.bf16.msra.mxu0 %v101
  %1541 = vmatprep.subr.bf16.mxu0 0
  %1542 = vmatpush1.bf16.msra.mxu0 %v102
  %1543 = vmatprep.subr.bf16.mxu0 0
  %1544 = vmatpush1.bf16.msra.mxu0 0
  %1545 = vmatprep.subr.bf16.mxu0 0
  %1546 = vmatpush1.bf16.msra.mxu0 0
  %1547 = vmatprep.subr.bf16.mxu0 0
  %1548 = vmatpush1.bf16.msra.mxu0 0
  %1549 = vmatprep.subr.bf16.mxu0 0
  %1550 = vmatpush1.bf16.msra.mxu0 0
  %1551 = vmatprep.subr.bf16.mxu0 0
  %1552 = vmatpush1.bf16.msra.mxu0 0
  %1553 = vmatprep.subr.bf16.mxu0 0
  %1554 = vmatpush1.bf16.msra.mxu0 0
  %1555 = vmatprep.subr.bf16.mxu0 0
  %1556 = vmatpush1.bf16.msra.mxu0 0
  %1557 = vmatprep.subr.bf16.mxu0 0
  %1558 = vmatpush1.bf16.msra.mxu0 0
  %1559 = vmatprep.mubr.bf16.mxu0 0
  %1560 = vmatmul.mubr.bf16.gmra.mrb[0].mxu0 %v1526
  %v1561 = vpop.f32.mrb[0].mxu0
  %v1562 = vadd.f32 0.0, %v1561
  %v1563 = vpop.f32.mrb[0].mxu0
  %v1564 = vpop.f32.mrb[0].mxu0
  %v1565 = vpop.f32.mrb[0].mxu0
  %1566 = vdwg.mxu0
  %1567 = vmatprep.subr.bf16.mxu0 0
  %1568 = vmatpush1.bf16.msra.mxu0 %v71
  %1569 = vmatprep.subr.bf16.mxu0 0
  %1570 = vmatpush1.bf16.msra.mxu0 %v72
  %1571 = vmatprep.subr.bf16.mxu0 0
  %1572 = vmatpush1.bf16.msra.mxu0 %v73
  %1573 = vmatprep.subr.bf16.mxu0 0
  %1574 = vmatpush1.bf16.msra.mxu0 %v74
  %1575 = vmatprep.subr.bf16.mxu0 0
  %1576 = vmatpush1.bf16.msra.mxu0 %v75
  %1577 = vmatprep.subr.bf16.mxu0 0
  %1578 = vmatpush1.bf16.msra.mxu0 %v76
  %1579 = vmatprep.subr.bf16.mxu0 0
  %1580 = vmatpush1.bf16.msra.mxu0 %v77
  %1581 = vmatprep.subr.bf16.mxu0 0
  %1582 = vmatpush1.bf16.msra.mxu0 %v78
  %1583 = vmatprep.subr.bf16.mxu0 0
  %1584 = vmatpush1.bf16.msra.mxu0 0
  %1585 = vmatprep.subr.bf16.mxu0 0
  %1586 = vmatpush1.bf16.msra.mxu0 0
  %1587 = vmatprep.subr.bf16.mxu0 0
  %1588 = vmatpush1.bf16.msra.mxu0 0
  %1589 = vmatprep.subr.bf16.mxu0 0
  %1590 = vmatpush1.bf16.msra.mxu0 0
  %1591 = vmatprep.subr.bf16.mxu0 0
  %1592 = vmatpush1.bf16.msra.mxu0 0
  %1593 = vmatprep.subr.bf16.mxu0 0
  %1594 = vmatpush1.bf16.msra.mxu0 0
  %1595 = vmatprep.subr.bf16.mxu0 0
  %1596 = vmatpush1.bf16.msra.mxu0 0
  %1597 = vmatprep.subr.bf16.mxu0 0
  %1598 = vmatpush1.bf16.msra.mxu0 0
  %1599 = vmatprep.mubr.bf16.mxu0 0
  %1600 = vmatmul.mubr.bf16.gmra.mrb[0].mxu0 %v1525
  %v1601 = vpop.f32.mrb[0].mxu0
  %v1602 = vadd.f32 %v1562, %v1601
  %v1603 = vpop.f32.mrb[0].mxu0
  %v1604 = vpop.f32.mrb[0].mxu0
  %v1605 = vpop.f32.mrb[0].mxu0
  %1606 = vdwg.mxu0
  %v1607 = vadd.f32 %v1602, %v108
  %v1608 = vxor.u32 %v1607, 2147483648
  %v1609 = vmul.f32 %v1608, 1.442695
  %v1610 = vpow.pop %v1609
  %v1611 = vadd.f32 %v1610, 1.0
  %v1612 = vrcp.pop %v1611
  %v1613 = vmul.f32 1.0, %v1612
  %v1614 = vtanh.pop %v1607
  %1615 = vrot.lane.b32.xlu0 %v1613, 96
  %v1616 = vpop.permute.xlu0 %1615
  %v1617 = vmul.f32 %v1616, %v1454
  %1618 = vrot.lane.b32.xlu0 %v1614, 64
  %v1619 = vpop.permute.xlu0 %1618
  %v1620 = vmul.f32 %v1613, %v1619
  %v1621 = vadd.f32 %v1617, %v1620
  %1622 = vrot.lane.b32.xlu0 %v1613, 32
  %v1623 = vpop.permute.xlu0 %1622
  %v1624 = vtanh.pop %v1621
  %v1625 = vmul.f32 %v1623, %v1624
  %vm1626 = vcmp.eq.s32.totalorder %v26, 7
  %v1627 = vsel %vm1626, 1, 0
  %1628 = vset.pattern.permute.xlu0 0
  %1629 = vperm.xlu0 %1628, %v1627
  %v1630 = vpop.permute.xlu0 %1629
  %vm1631 = vcmp.eq.s32.totalorder %v1630, 1
  %v1632 = vsel %vm1631, %v1625, %v1465
  %1633 = vmatprep.subr.bf16.mxu0 0
  %1634 = vmatpush1.bf16.msra.mxu0 %v47
  %1635 = vmatprep.subr.bf16.mxu0 0
  %1636 = vmatpush1.bf16.msra.mxu0 %v48
  %1637 = vmatprep.subr.bf16.mxu0 0
  %1638 = vmatpush1.bf16.msra.mxu0 %v49
  %1639 = vmatprep.subr.bf16.mxu0 0
  %1640 = vmatpush1.bf16.msra.mxu0 %v50
  %1641 = vmatprep.subr.bf16.mxu0 0
  %1642 = vmatpush1.bf16.msra.mxu0 %v51
  %1643 = vmatprep.subr.bf16.mxu0 0
  %1644 = vmatpush1.bf16.msra.mxu0 %v52
  %1645 = vmatprep.subr.bf16.mxu0 0
  %1646 = vmatpush1.bf16.msra.mxu0 %v53
  %1647 = vmatprep.subr.bf16.mxu0 0
  %1648 = vmatpush1.bf16.msra.mxu0 %v54
  %1649 = vmatprep.subr.bf16.mxu0 0
  %1650 = vmatpush1.bf16.msra.mxu0 0
  %1651 = vmatprep.subr.bf16.mxu0 0
  %1652 = vmatpush1.bf16.msra.mxu0 0
  %1653 = vmatprep.subr.bf16.mxu0 0
  %1654 = vmatpush1.bf16.msra.mxu0 0
  %1655 = vmatprep.subr.bf16.mxu0 0
  %1656 = vmatpush1.bf16.msra.mxu0 0
  %1657 = vmatprep.subr.bf16.mxu0 0
  %1658 = vmatpush1.bf16.msra.mxu0 0
  %1659 = vmatprep.subr.bf16.mxu0 0
  %1660 = vmatpush1.bf16.msra.mxu0 0
  %1661 = vmatprep.subr.bf16.mxu0 0
  %1662 = vmatpush1.bf16.msra.mxu0 0
  %1663 = vmatprep.subr.bf16.mxu0 0
  %1664 = vmatpush1.bf16.msra.mxu0 0
  %1665 = vmatprep.mubr.bf16.mxu0 0
  %1666 = vmatmul.mubr.bf16.gmra.mrb[0].mxu0 %v1525
  %v1667 = vpop.f32.mrb[0].mxu0
  %v1668 = vadd.f32 0.0, %v1667
  %v1669 = vpop.f32.mrb[0].mxu0
  %v1670 = vpop.f32.mrb[0].mxu0
  %v1671 = vpop.f32.mrb[0].mxu0
  %1672 = vdwg.mxu0
  %v1673 = vadd.f32 %v462, %v1668
  %v1674 = vxor.u32 %v1673, 2147483648
  %v1675 = vmul.f32 %v1674, 1.442695
  %v1676 = vpow.pop %v1675
  %v1677 = vadd.f32 %v1676, 1.0
  %v1678 = vrcp.pop %v1677
  %v1679 = vmul.f32 1.0, %v1678
  %v1680 = vtanh.pop %v1673
  %1681 = vrot.lane.b32.xlu0 %v1679, 96
  %v1682 = vpop.permute.xlu0 %1681
  %v1683 = vmul.f32 %v1682, %v1520
  %1684 = vrot.lane.b32.xlu0 %v1680, 64
  %v1685 = vpop.permute.xlu0 %1684
  %v1686 = vmul.f32 %v1679, %v1685
  %v1687 = vadd.f32 %v1683, %v1686
  %1688 = vrot.lane.b32.xlu0 %v1679, 32
  %v1689 = vpop.permute.xlu0 %1688
  %v1690 = vtanh.pop %v1687
  %v1691 = vmul.f32 %v1689, %v1690
  %v1692 = vpack.c.bf16 %v1691, %v1691
  %v1693 = vpack.c.bf16 %v1625, %v1625
  %1694 = vmatprep.subr.bf16.mxu0 0
  %1695 = vmatpush1.bf16.msra.mxu0 %v95
  %1696 = vmatprep.subr.bf16.mxu0 0
  %1697 = vmatpush1.bf16.msra.mxu0 %v96
  %1698 = vmatprep.subr.bf16.mxu0 0
  %1699 = vmatpush1.bf16.msra.mxu0 %v97
  %1700 = vmatprep.subr.bf16.mxu0 0
  %1701 = vmatpush1.bf16.msra.mxu0 %v98
  %1702 = vmatprep.subr.bf16.mxu0 0
  %1703 = vmatpush1.bf16.msra.mxu0 %v99
  %1704 = vmatprep.subr.bf16.mxu0 0
  %1705 = vmatpush1.bf16.msra.mxu0 %v100
  %1706 = vmatprep.subr.bf16.mxu0 0
  %1707 = vmatpush1.bf16.msra.mxu0 %v101
  %1708 = vmatprep.subr.bf16.mxu0 0
  %1709 = vmatpush1.bf16.msra.mxu0 %v102
  %1710 = vmatprep.subr.bf16.mxu0 0
  %1711 = vmatpush1.bf16.msra.mxu0 0
  %1712 = vmatprep.subr.bf16.mxu0 0
  %1713 = vmatpush1.bf16.msra.mxu0 0
  %1714 = vmatprep.subr.bf16.mxu0 0
  %1715 = vmatpush1.bf16.msra.mxu0 0
  %1716 = vmatprep.subr.bf16.mxu0 0
  %1717 = vmatpush1.bf16.msra.mxu0 0
  %1718 = vmatprep.subr.bf16.mxu0 0
  %1719 = vmatpush1.bf16.msra.mxu0 0
  %1720 = vmatprep.subr.bf16.mxu0 0
  %1721 = vmatpush1.bf16.msra.mxu0 0
  %1722 = vmatprep.subr.bf16.mxu0 0
  %1723 = vmatpush1.bf16.msra.mxu0 0
  %1724 = vmatprep.subr.bf16.mxu0 0
  %1725 = vmatpush1.bf16.msra.mxu0 0
  %1726 = vmatprep.mubr.bf16.mxu0 0
  %1727 = vmatmul.mubr.bf16.gmra.mrb[0].mxu0 %v1693
  %v1728 = vpop.f32.mrb[0].mxu0
  %v1729 = vadd.f32 0.0, %v1728
  %v1730 = vpop.f32.mrb[0].mxu0
  %v1731 = vpop.f32.mrb[0].mxu0
  %v1732 = vpop.f32.mrb[0].mxu0
  %1733 = vdwg.mxu0
  %1734 = vmatprep.subr.bf16.mxu0 0
  %1735 = vmatpush1.bf16.msra.mxu0 %v71
  %1736 = vmatprep.subr.bf16.mxu0 0
  %1737 = vmatpush1.bf16.msra.mxu0 %v72
  %1738 = vmatprep.subr.bf16.mxu0 0
  %1739 = vmatpush1.bf16.msra.mxu0 %v73
  %1740 = vmatprep.subr.bf16.mxu0 0
  %1741 = vmatpush1.bf16.msra.mxu0 %v74
  %1742 = vmatprep.subr.bf16.mxu0 0
  %1743 = vmatpush1.bf16.msra.mxu0 %v75
  %1744 = vmatprep.subr.bf16.mxu0 0
  %1745 = vmatpush1.bf16.msra.mxu0 %v76
  %1746 = vmatprep.subr.bf16.mxu0 0
  %1747 = vmatpush1.bf16.msra.mxu0 %v77
  %1748 = vmatprep.subr.bf16.mxu0 0
  %1749 = vmatpush1.bf16.msra.mxu0 %v78
  %1750 = vmatprep.subr.bf16.mxu0 0
  %1751 = vmatpush1.bf16.msra.mxu0 0
  %1752 = vmatprep.subr.bf16.mxu0 0
  %1753 = vmatpush1.bf16.msra.mxu0 0
  %1754 = vmatprep.subr.bf16.mxu0 0
  %1755 = vmatpush1.bf16.msra.mxu0 0
  %1756 = vmatprep.subr.bf16.mxu0 0
  %1757 = vmatpush1.bf16.msra.mxu0 0
  %1758 = vmatprep.subr.bf16.mxu0 0
  %1759 = vmatpush1.bf16.msra.mxu0 0
  %1760 = vmatprep.subr.bf16.mxu0 0
  %1761 = vmatpush1.bf16.msra.mxu0 0
  %1762 = vmatprep.subr.bf16.mxu0 0
  %1763 = vmatpush1.bf16.msra.mxu0 0
  %1764 = vmatprep.subr.bf16.mxu0 0
  %1765 = vmatpush1.bf16.msra.mxu0 0
  %1766 = vmatprep.mubr.bf16.mxu0 0
  %1767 = vmatmul.mubr.bf16.gmra.mrb[0].mxu0 %v1692
  %v1768 = vpop.f32.mrb[0].mxu0
  %v1769 = vadd.f32 %v1729, %v1768
  %v1770 = vpop.f32.mrb[0].mxu0
  %v1771 = vpop.f32.mrb[0].mxu0
  %v1772 = vpop.f32.mrb[0].mxu0
  %1773 = vdwg.mxu0
  %v1774 = vadd.f32 %v1769, %v108
  %v1775 = vxor.u32 %v1774, 2147483648
  %v1776 = vmul.f32 %v1775, 1.442695
  %v1777 = vpow.pop %v1776
  %v1778 = vadd.f32 %v1777, 1.0
  %v1779 = vrcp.pop %v1778
  %v1780 = vmul.f32 1.0, %v1779
  %v1781 = vtanh.pop %v1774
  %1782 = vrot.lane.b32.xlu0 %v1780, 96
  %v1783 = vpop.permute.xlu0 %1782
  %v1784 = vmul.f32 %v1783, %v1621
  %1785 = vrot.lane.b32.xlu0 %v1781, 64
  %v1786 = vpop.permute.xlu0 %1785
  %v1787 = vmul.f32 %v1780, %v1786
  %v1788 = vadd.f32 %v1784, %v1787
  %1789 = vrot.lane.b32.xlu0 %v1780, 32
  %v1790 = vpop.permute.xlu0 %1789
  %v1791 = vtanh.pop %v1788
  %v1792 = vmul.f32 %v1790, %v1791
  %vm1793 = vcmp.eq.s32.totalorder %v26, 8
  %v1794 = vsel %vm1793, 1, 0
  %1795 = vset.pattern.permute.xlu0 0
  %1796 = vperm.xlu0 %1795, %v1794
  %v1797 = vpop.permute.xlu0 %1796
  %vm1798 = vcmp.eq.s32.totalorder %v1797, 1
  %v1799 = vsel %vm1798, %v1792, %v1632
  %v1800 = vlaneseq
  %v1801 = vshrl.u32 %v1800, 7
  %v1802 = vsub.s32 0, %v1801
  %v1803 = vrot.slane %v141, %v1802
  %1804 = vmatprep.subr.mxu0 0.0
  %1805 = vmatpush1.msra.mxu0 %v113
  %1806 = vmatprep.subr.mxu0 0.0
  %1807 = vmatpush1.msra.mxu0 %v114
  %1808 = vmatprep.subr.mxu0 0.0
  %1809 = vmatpush1.msra.mxu0 %v115
  %1810 = vmatprep.subr.mxu0 0.0
  %1811 = vmatpush1.msra.mxu0 %v116
  %1812 = vmatprep.subr.mxu0 0.0
  %1813 = vmatpush1.msra.mxu0 %v117
  %1814 = vmatprep.subr.mxu0 0.0
  %1815 = vmatpush1.msra.mxu0 %v118
  %1816 = vmatprep.subr.mxu0 0.0
  %1817 = vmatpush1.msra.mxu0 %v119
  %1818 = vmatprep.subr.mxu0 0.0
  %1819 = vmatpush1.msra.mxu0 %v120
  %1820 = vmatprep.subr.mxu0 0.0
  %1821 = vmatpush1.msra.mxu0 %v121
  %1822 = vmatprep.subr.mxu0 0.0
  %1823 = vmatpush1.msra.mxu0 %v122
  %1824 = vmatprep.subr.mxu0 0.0
  %1825 = vmatpush1.msra.mxu0 %v123
  %1826 = vmatprep.subr.mxu0 0.0
  %1827 = vmatpush1.msra.mxu0 %v124
  %1828 = vmatprep.subr.mxu0 0.0
  %1829 = vmatpush1.msra.mxu0 %v125
  %1830 = vmatprep.subr.mxu0 0.0
  %1831 = vmatpush1.msra.mxu0 %v126
  %1832 = vmatprep.subr.mxu0 0.0
  %1833 = vmatpush1.msra.mxu0 %v127
  %1834 = vmatprep.subr.mxu0 0.0
  %1835 = vmatpush1.msra.mxu0 %v128
  %1836 = vmatprep.subr.mxu0 0.0
  %1837 = vmatpush1.msra.mxu0 0.0
  %1838 = vmatprep.subr.mxu0 0.0
  %1839 = vmatpush1.msra.mxu0 0.0
  %1840 = vmatprep.subr.mxu0 0.0
  %1841 = vmatpush1.msra.mxu0 0.0
  %1842 = vmatprep.subr.mxu0 0.0
  %1843 = vmatpush1.msra.mxu0 0.0
  %1844 = vmatprep.subr.mxu0 0.0
  %1845 = vmatpush1.msra.mxu0 0.0
  %1846 = vmatprep.subr.mxu0 0.0
  %1847 = vmatpush1.msra.mxu0 0.0
  %1848 = vmatprep.subr.mxu0 0.0
  %1849 = vmatpush1.msra.mxu0 0.0
  %1850 = vmatprep.subr.mxu0 0.0
  %1851 = vmatpush1.msra.mxu0 0.0
  %1852 = vmatprep.subr.mxu0 0.0
  %1853 = vmatpush1.msra.mxu0 0.0
  %1854 = vmatprep.subr.mxu0 0.0
  %1855 = vmatpush1.msra.mxu0 0.0
  %1856 = vmatprep.subr.mxu0 0.0
  %1857 = vmatpush1.msra.mxu0 0.0
  %1858 = vmatprep.subr.mxu0 0.0
  %1859 = vmatpush1.msra.mxu0 0.0
  %1860 = vmatprep.subr.mxu0 0.0
  %1861 = vmatpush1.msra.mxu0 0.0
  %1862 = vmatprep.subr.mxu0 0.0
  %1863 = vmatpush1.msra.mxu0 0.0
  %1864 = vmatprep.subr.mxu0 0.0
  %1865 = vmatpush1.msra.mxu0 0.0
  %1866 = vmatprep.subr.mxu0 0.0
  %1867 = vmatpush1.msra.mxu0 0.0
  %1868 = vmatprep.mubr.f32.mxu0 0.0
  %1869 = vmatmul.mubr.f32.gmra.mrb[0].mxu0 %v1799
  %v1870 = vpop.f32.mrb[0].mxu0
  %v1871 = vadd.f32 %v1803, %v1870
  %v1872 = vpop.f32.mrb[0].mxu0
  %1873 = vdwg.mxu0
  %v1874 = vtanh.pop %v1871
  %v1875 = vld [vmem:[%s1] sm:$0xff]
  %v1876 = vlaneseq
  %v1877 = vshrl.u32 %v1876, 7
  %v1878 = vsub.s32 0, %v1877
  %v1879 = vrot.slane %v142, %v1878
  %vm1880 = vcmask 523264
  %v1882 = vsel %vm1880, %v1875, 0
  %1884 = vmatprep.subr.mxu0 0.0
  %1885 = vmatpush1.msra.mxu0 %v129
  %1886 = vmatprep.subr.mxu0 0.0
  %1887 = vmatpush1.msra.mxu0 %v130
  %1888 = vmatprep.subr.mxu0 0.0
  %1889 = vmatpush1.msra.mxu0 %v131
  %1890 = vmatprep.subr.mxu0 0.0
  %1891 = vmatpush1.msra.mxu0 %v132
  %1892 = vmatprep.subr.mxu0 0.0
  %1893 = vmatpush1.msra.mxu0 %v133
  %1894 = vmatprep.subr.mxu0 0.0
  %1895 = vmatpush1.msra.mxu0 %v134
  %1896 = vmatprep.subr.mxu0 0.0
  %1897 = vmatpush1.msra.mxu0 %v135
  %1898 = vmatprep.subr.mxu0 0.0
  %1899 = vmatpush1.msra.mxu0 %v136
  %1900 = vmatprep.subr.mxu0 0.0
  %1901 = vmatpush1.msra.mxu0 0.0
  %1902 = vmatprep.subr.mxu0 0.0
  %1903 = vmatpush1.msra.mxu0 0.0
  %1904 = vmatprep.subr.mxu0 0.0
  %1905 = vmatpush1.msra.mxu0 0.0
  %1906 = vmatprep.subr.mxu0 0.0
  %1907 = vmatpush1.msra.mxu0 0.0
  %1908 = vmatprep.subr.mxu0 0.0
  %1909 = vmatpush1.msra.mxu0 0.0
  %1910 = vmatprep.subr.mxu0 0.0
  %1911 = vmatpush1.msra.mxu0 0.0
  %1912 = vmatprep.subr.mxu0 0.0
  %1913 = vmatpush1.msra.mxu0 0.0
  %1914 = vmatprep.subr.mxu0 0.0
  %1915 = vmatpush1.msra.mxu0 0.0
  %1916 = vmatprep.subr.mxu0 0.0
  %1917 = vmatpush1.msra.mxu0 0.0
  %1918 = vmatprep.subr.mxu0 0.0
  %1919 = vmatpush1.msra.mxu0 0.0
  %1920 = vmatprep.subr.mxu0 0.0
  %1921 = vmatpush1.msra.mxu0 0.0
  %1922 = vmatprep.subr.mxu0 0.0
  %1923 = vmatpush1.msra.mxu0 0.0
  %1924 = vmatprep.subr.mxu0 0.0
  %1925 = vmatpush1.msra.mxu0 0.0
  %1926 = vmatprep.subr.mxu0 0.0
  %1927 = vmatpush1.msra.mxu0 0.0
  %1928 = vmatprep.subr.mxu0 0.0
  %1929 = vmatpush1.msra.mxu0 0.0
  %1930 = vmatprep.subr.mxu0 0.0
  %1931 = vmatpush1.msra.mxu0 0.0
  %1932 = vmatprep.subr.mxu0 0.0
  %1933 = vmatpush1.msra.mxu0 0.0
  %1934 = vmatprep.subr.mxu0 0.0
  %1935 = vmatpush1.msra.mxu0 0.0
  %1936 = vmatprep.subr.mxu0 0.0
  %1937 = vmatpush1.msra.mxu0 0.0
  %1938 = vmatprep.subr.mxu0 0.0
  %1939 = vmatpush1.msra.mxu0 0.0
  %1940 = vmatprep.subr.mxu0 0.0
  %1941 = vmatpush1.msra.mxu0 0.0
  %1942 = vmatprep.subr.mxu0 0.0
  %1943 = vmatpush1.msra.mxu0 0.0
  %1944 = vmatprep.subr.mxu0 0.0
  %1945 = vmatpush1.msra.mxu0 0.0
  %1946 = vmatprep.subr.mxu0 0.0
  %1947 = vmatpush1.msra.mxu0 0.0
  %1948 = vmatprep.mubr.f32.mxu0 0.0
  %1949 = vmatmul.mubr.f32.gmra.mrb[0].mxu0 %v1882
  %v1950 = vpop.f32.mrb[0].mxu0
  %v1951 = vadd.f32 %v1879, %v1950
  %v1952 = vpop.f32.mrb[0].mxu0
  %1953 = vdwg.mxu0
  %v1954 = vtanh.pop %v1951
  %v1955 = vmul.f32 %v1874, %v1954
  %v1956 = vlaneseq
  %v1957 = vshrl.u32 %v1956, 7
  %v1958 = vsub.s32 0, %v1957
  %v1959 = vrot.slane %v143, %v1958
  %v1961 = vsel %vm194, %v1955, 0
  %1963 = vmatprep.subr.mxu0 0.0
  %1964 = vmatpush1.msra.mxu0 %v137
  %1965 = vmatprep.subr.mxu0 0.0
  %1966 = vmatpush1.msra.mxu0 %v138
  %1967 = vmatprep.subr.mxu0 0.0
  %1968 = vmatpush1.msra.mxu0 %v139
  %1969 = vmatprep.subr.mxu0 0.0
  %1970 = vmatpush1.msra.mxu0 %v140
  %1971 = vmatprep.subr.mxu0 0.0
  %1972 = vmatpush1.msra.mxu0 0.0
  %1973 = vmatprep.subr.mxu0 0.0
  %1974 = vmatpush1.msra.mxu0 0.0
  %1975 = vmatprep.subr.mxu0 0.0
  %1976 = vmatpush1.msra.mxu0 0.0
  %1977 = vmatprep.subr.mxu0 0.0
  %1978 = vmatpush1.msra.mxu0 0.0
  %1979 = vmatprep.subr.mxu0 0.0
  %1980 = vmatpush1.msra.mxu0 0.0
  %1981 = vmatprep.subr.mxu0 0.0
  %1982 = vmatpush1.msra.mxu0 0.0
  %1983 = vmatprep.subr.mxu0 0.0
  %1984 = vmatpush1.msra.mxu0 0.0
  %1985 = vmatprep.subr.mxu0 0.0
  %1986 = vmatpush1.msra.mxu0 0.0
  %1987 = vmatprep.subr.mxu0 0.0
  %1988 = vmatpush1.msra.mxu0 0.0
  %1989 = vmatprep.subr.mxu0 0.0
  %1990 = vmatpush1.msra.mxu0 0.0
  %1991 = vmatprep.subr.mxu0 0.0
  %1992 = vmatpush1.msra.mxu0 0.0
  %1993 = vmatprep.subr.mxu0 0.0
  %1994 = vmatpush1.msra.mxu0 0.0
  %1995 = vmatprep.subr.mxu0 0.0
  %1996 = vmatpush1.msra.mxu0 0.0
  %1997 = vmatprep.subr.mxu0 0.0
  %1998 = vmatpush1.msra.mxu0 0.0
  %1999 = vmatprep.subr.mxu0 0.0
  %2000 = vmatpush1.msra.mxu0 0.0
  %2001 = vmatprep.subr.mxu0 0.0
  %2002 = vmatpush1.msra.mxu0 0.0
  %2003 = vmatprep.subr.mxu0 0.0
  %2004 = vmatpush1.msra.mxu0 0.0
  %2005 = vmatprep.subr.mxu0 0.0
  %2006 = vmatpush1.msra.mxu0 0.0
  %2007 = vmatprep.subr.mxu0 0.0
  %2008 = vmatpush1.msra.mxu0 0.0
  %2009 = vmatprep.subr.mxu0 0.0
  %2010 = vmatpush1.msra.mxu0 0.0
  %2011 = vmatprep.subr.mxu0 0.0
  %2012 = vmatpush1.msra.mxu0 0.0
  %2013 = vmatprep.subr.mxu0 0.0
  %2014 = vmatpush1.msra.mxu0 0.0
  %2015 = vmatprep.subr.mxu0 0.0
  %2016 = vmatpush1.msra.mxu0 0.0
  %2017 = vmatprep.subr.mxu0 0.0
  %2018 = vmatpush1.msra.mxu0 0.0
  %2019 = vmatprep.subr.mxu0 0.0
  %2020 = vmatpush1.msra.mxu0 0.0
  %2021 = vmatprep.subr.mxu0 0.0
  %2022 = vmatpush1.msra.mxu0 0.0
  %2023 = vmatprep.subr.mxu0 0.0
  %2024 = vmatpush1.msra.mxu0 0.0
  %2025 = vmatprep.subr.mxu0 0.0
  %2026 = vmatpush1.msra.mxu0 0.0
  %2027 = vmatprep.mubr.f32.mxu0 0.0
  %2028 = vmatmul.mubr.f32.gmra.mrb[0].mxu0 %v1961
  %v2029 = vpop.f32.mrb[0].mxu0
  %v2030 = vadd.f32 %v1959, %v2029
  %v2031 = vpop.f32.mrb[0].mxu0
  %2032 = vdwg.mxu0
  %vm2033 = vcmask 130048
  %2034 = vst.msk [vmem:[%s4] sm:$0xff] %vm2033, %v2030
  // Predicated region
  $region18: #{vqa_forward.1} parent=0 // pred_check
    _
  $region19: #{vqa_forward.1} parent=0 // pred_check_branch
    %2036 = sbr.rel (0) target = $region21
  $region20: #{vqa_forward.1} parent=0 // pred_region
    _
  $region21: #{vqa_forward.1} parent=0 // pred_fallthru
    _
  // Predicated region
  $region22: #{vqa_forward.1} parent=0 // pred_check
    _
  $region23: #{vqa_forward.1} parent=0 // pred_check_branch
    %2038 = sbr.rel (0) target = $region25
  $region24: #{vqa_forward.1} parent=0 // pred_region
    _
  $region25: #{vqa_forward.1} parent=0 // pred_fallthru
    _

</llo_original>
